<compile_context>
chip_gen: v5e
topology: v5e:2x2
jax: 0.10.0
libtpu: 0.0.40
codegen_flags: <defaults>
</compile_context>

<pallas_src>
import functools

import numpy as np

import jax
import jax.numpy as jnp
from jax import lax
from jax.experimental import pallas as pl
from jax.experimental.pallas import tpu as pltpu

# ----------------------------- configuration --------------------------------
NUM_CLASSES = 20
STRIDE = 32
ANCHOR_SIZE = [[1.19, 1.98], [2.79, 4.60], [4.54, 8.93], [8.06, 5.29], [10.32, 10.65]]
NUM_ANCHORS = len(ANCHOR_SIZE)

FEAT_DIM = 128   # synthetic backbone output dim (cfg-dependent in the original)
NECK_DIM = 128   # original module hardcodes 512; reduced for a small demo

# lane-periodic fused layouts (one 25-lane group per anchor, 125 real lanes):
#   pred slab group : [tx, ty, tw, th, cls0..cls19, obj]
#   out  slab group : [x1, y1, x2, y2, s0..s19,  unused]
PERIOD = 25
OUT_PER_ANCHOR = 4 + NUM_CLASSES   # 24
LANES = 128                        # lane-dense width (125 real, 3 pad)


# ------------------------------ small helpers --------------------------------
def _shift_lanes(x, k):
    """result[:, j] = x[:, j - k] (static k, zero-filled at the edges)."""
    n = x.shape[-1]
    pad = jnp.zeros((x.shape[0], abs(k)), x.dtype)
    if k > 0:
        return jnp.concatenate([pad, x[:, :n - k]], axis=-1)
    return jnp.concatenate([x[:, -k:], pad], axis=-1)


# ------------------------------ Pallas kernel --------------------------------
def _yolov2_fused_kernel(fmp_w, x_ref,
                         bbw_ref, bbb_ref, nkw_ref, nkb_ref,
                         hdw_ref, hdb_ref, pw_ref, pb_ref,
                         vec_ref, objmat_ref, out_ref):
    """Fused backbone/neck/head/pred/decode for one tile of TM spatial rows.

    x_ref   : [TM, C*32*32] bf16 patchified pixels
    out_ref : [TM, 128] f32, per-anchor 25-lane groups [x1,y1,x2,y2,s0..19,pad]
    """
    f32, bf16 = jnp.float32, jnp.bfloat16

    # ---- MXU chain (bf16 inputs, f32 accumulation; bias + ReLU in f32) ----
    feat = jnp.dot(x_ref[...], bbw_ref[...], preferred_element_type=f32) + bbb_ref[...]
    feat = jnp.maximum(feat, 0.0)
    feat = jnp.dot(feat.astype(bf16), nkw_ref[...], preferred_element_type=f32) + nkb_ref[...]
    feat = jnp.maximum(feat, 0.0)
    # fused head branches -> [TM, 2*NECK_DIM] = [cls_feat | reg_feat]
    head = jnp.dot(feat.astype(bf16), hdw_ref[...], preferred_element_type=f32) + hdb_ref[...]
    head = jnp.maximum(head, 0.0)
    # fused obj/cls/reg prediction convs -> lane-periodic [TM, 128] slab
    pred = jnp.dot(head.astype(bf16), pw_ref[...], preferred_element_type=f32) + pb_ref[...]

    # ---- whole-slab decode (no per-anchor loops, no narrow slices) ----
    vec = vec_ref[...]                       # [8,128] constant per-lane vectors
    v_ctr, m_twth, v_wh = vec[0:1], vec[1:2], vec[2:3]
    v_ax, v_ay = vec[3:4], vec[4:5]

    tm = out_ref.shape[0]
    base = pl.program_id(0) * tm
    row = (lax.broadcasted_iota(jnp.int32, (tm, LANES), 0) + base).astype(f32)
    ay = jnp.floor((row + 0.5) / float(fmp_w))          # grid-cell y = row // W
    ax = row - ay * float(fmp_w)                        # grid-cell x = row %  W

    s = jax.nn.sigmoid(pred)                            # one EUP pass, full slab
    wh = jnp.exp(pred * m_twth) * v_wh                  # 0.5*exp(t)*anchor at tw/th lanes
    ctr = s * v_ctr                                     # sigmoid(t)*stride at tx/ty lanes
    ctr = ctr + _shift_lanes(ctr, 2)                    # duplicate onto x2/y2 lanes
    box = ctr + ax * v_ax + ay * v_ay + wh - _shift_lanes(wh, -2)
    # obj broadcast across its 20 class lanes via a constant 0/1 matrix (MXU slack);
    # the matrix has zero columns at box/pad lanes, so sqrt(obj*s) is 0 there.
    obj = jnp.dot(s, objmat_ref[...], preferred_element_type=f32)
    out_ref[...] = box + jnp.sqrt(obj * s)              # single full-128-lane store


# --------------------------- pallas_call wrapper ------------------------------
_WEIGHT_KEYS = ("bb_w", "bb_b", "nk_w", "nk_b", "hd_w", "hd_b",
                "pred_w", "pred_b", "dec_vec", "obj_mat")


def yolov2_fused_pallas(fused, x_patch, fmp_w, tm):
    """x_patch: [M_pad, Kp] bf16 -> [M_pad, 128] f32 decoded slab."""
    m_pad, kp = x_patch.shape
    tile = lambda i: (i, 0)      # per-row-tile arrays
    full = lambda i: (0, 0)      # grid-invariant weights / constants (resident)

    return pl.pallas_call(
        functools.partial(_yolov2_fused_kernel, fmp_w),
        grid=(m_pad // tm,),
        in_specs=[pl.BlockSpec((tm, kp), tile)]
                 + [pl.BlockSpec(fused[k].shape, full) for k in _WEIGHT_KEYS],
        out_specs=pl.BlockSpec((tm, LANES), tile),
        out_shape=jax.ShapeDtypeStruct((m_pad, LANES), jnp.float32),
        compiler_params=pltpu.CompilerParams(
            dimension_semantics=("parallel",),
            vmem_limit_bytes=32 * 1024 * 1024),
    )(x_patch, *(fused[k] for k in _WEIGHT_KEYS))


# ----------------------------- parameter setup --------------------------------
def init_params(key, in_ch=3):
    """Deterministic synthetic parameters (shapes implied by YOLOv2.__init__)."""
    ks = jax.random.split(key, 14)
    patch_dim = in_ch * STRIDE * STRIDE
    w = lambda k, shape: jax.random.normal(k, shape, jnp.float32) * 0.02
    b = lambda k, n: jax.random.normal(k, (n,), jnp.float32) * 0.1
    return {
        # synthetic backbone: patchify(stride 32) -> 1x1 conv to FEAT_DIM
        "bb_w": w(ks[0], (patch_dim, FEAT_DIM)), "bb_b": b(ks[1], FEAT_DIM),
        # neck: 1x1 conv FEAT_DIM -> NECK_DIM, ReLU
        "nk_w": w(ks[2], (FEAT_DIM, NECK_DIM)), "nk_b": b(ks[3], NECK_DIM),
        # head: two parallel branches (cls_feat, reg_feat), each 1x1 conv + ReLU
        "hc_w": w(ks[4], (NECK_DIM, NECK_DIM)), "hc_b": b(ks[5], NECK_DIM),
        "hr_w": w(ks[6], (NECK_DIM, NECK_DIM)), "hr_b": b(ks[7], NECK_DIM),
        # prediction 1x1 convs (obj_pred / cls_pred / reg_pred)
        "obj_w": w(ks[8], (NECK_DIM, 1 * NUM_ANCHORS)), "obj_b": b(ks[9], 1 * NUM_ANCHORS),
        "cls_w": w(ks[10], (NECK_DIM, NUM_CLASSES * NUM_ANCHORS)),
        "cls_b": b(ks[11], NUM_CLASSES * NUM_ANCHORS),
        "reg_w": w(ks[12], (NECK_DIM, 4 * NUM_ANCHORS)), "reg_b": b(ks[13], 4 * NUM_ANCHORS),
    }


def fuse_params(params):
    """Deploy-time weight fusion + lane-periodic re-layout + decode constants."""
    bf16 = jnp.bfloat16
    a_n, c_n, d = NUM_ANCHORS, NUM_CLASSES, NECK_DIM

    # head branches fused into one [D, 2D] matmul: feat -> [cls_feat | reg_feat]
    hd_w = jnp.concatenate([params["hc_w"], params["hr_w"]], axis=1)
    hd_b = jnp.concatenate([params["hc_b"], params["hr_b"]])

    obj_w = np.asarray(params["obj_w"]); obj_b = np.asarray(params["obj_b"])
    cls_w = np.asarray(params["cls_w"]); cls_b = np.asarray(params["cls_b"])
    reg_w = np.asarray(params["reg_w"]); reg_b = np.asarray(params["reg_b"])

    # obj/cls/reg prediction convs fused into one [2D, 128] matmul whose columns
    # follow the per-anchor 25-lane layout [tx,ty,tw,th,cls0..19,obj].
    pred_w = np.zeros((2 * d, LANES), np.float32)
    pred_b = np.zeros((LANES,), np.float32)
    # constant decode vectors (per lane) + obj->class-lane broadcast matrix
    vec = np.zeros((8, LANES), np.float32)
    obj_mat = np.zeros((LANES, LANES), np.float32)
    for a in range(a_n):
        i = PERIOD * a
        aw, ah = ANCHOR_SIZE[a]
        # weights: reg & obj read reg_feat (rows d:2d), cls reads cls_feat (rows :d)
        pred_w[d:, i:i + 4] = reg_w[:, 4 * a:4 * a + 4]
        pred_w[:d, i + 4:i + 4 + c_n] = cls_w[:, c_n * a:c_n * (a + 1)]
        pred_w[d:, i + 24] = obj_w[:, a]
        pred_b[i:i + 4] = reg_b[4 * a:4 * a + 4]
        pred_b[i + 4:i + 4 + c_n] = cls_b[c_n * a:c_n * (a + 1)]
        pred_b[i + 24] = obj_b[a]
        # decode constants
        vec[0, i + 0] = STRIDE; vec[0, i + 1] = STRIDE        # sigmoid(t)*stride lanes
        vec[1, i + 2] = 1.0;    vec[1, i + 3] = 1.0           # tw/th mask (for exp)
        vec[2, i + 2] = 0.5 * aw; vec[2, i + 3] = 0.5 * ah    # 0.5*anchor_wh
        vec[3, i + 0] = STRIDE; vec[3, i + 2] = STRIDE        # + anchor_x*stride (x1,x2)
        vec[4, i + 1] = STRIDE; vec[4, i + 3] = STRIDE        # + anchor_y*stride (y1,y2)
        obj_mat[i + 24, i + 4:i + 4 + c_n] = 1.0              # obj -> 20 class lanes

    return {
        "bb_w": params["bb_w"].astype(bf16), "bb_b": params["bb_b"].reshape(1, -1),
        "nk_w": params["nk_w"].astype(bf16), "nk_b": params["nk_b"].reshape(1, -1),
        "hd_w": hd_w.astype(bf16),           "hd_b": hd_b.reshape(1, -1),
        "pred_w": jnp.asarray(pred_w, bf16), "pred_b": jnp.asarray(pred_b).reshape(1, -1),
        "dec_vec": jnp.asarray(vec),         "obj_mat": jnp.asarray(obj_mat),
    }


# -------------------------------- forward ------------------------------------
def _round16(v):
    return ((v + 15) // 16) * 16


def _pick_tm(m):
    """Per-generation TM heuristic (see header): small grids keep padding tiny,
    large grids use <=512-row tiles with >=2 grid steps for the v7x megacore."""
    if m < 256:
        return _round16(m)
    return min(512, _round16((m + 1) // 2))


def _patchify(img_chw, fh, fw, ch):
    x = jnp.transpose(img_chw, (1, 2, 0))                  # [H,W,C]
    x = x.reshape(fh, STRIDE, fw, STRIDE, ch)
    x = jnp.transpose(x, (0, 2, 1, 3, 4))
    return x.reshape(fh * fw, STRIDE * STRIDE * ch)


@functools.partial(jax.jit, static_argnames=("tm",))
def yolov2_deploy_forward(fused, x_nchw, tm=None):
    """Deploy-mode inference: [H/32 * W/32 * A, 4 + num_classes] for batch item 0."""
    _, ch, h, w = x_nchw.shape
    fh, fw = h // STRIDE, w // STRIDE
    m = fh * fw

    # deploy keeps only batch 0 -> slice BEFORE the backbone; cast to bf16 before
    # the relayout/pad so the image is only streamed once at 2 B/elem.
    xp = _patchify(x_nchw[0].astype(jnp.bfloat16), fh, fw, ch)

    tm = _pick_tm(m) if tm is None else tm
    m_pad = ((m + tm - 1) // tm) * tm
    xp = jnp.pad(xp, ((0, m_pad - m), (0, 0)))

    out = yolov2_fused_pallas(fused, xp, fw, tm)            # [M_pad, 128]
    # strip row/lane padding; row order (h, w, a) matches permute(0,2,3,1).view
    out = out[:m, :NUM_ANCHORS * PERIOD].reshape(m * NUM_ANCHORS, PERIOD)
    return out[:, :OUT_PER_ANCHOR]


# ------------------------- pure-JAX reference (deploy) ------------------------
def yolov2_reference(params, x_nchw):
    """Straight-line jnp port of the PyTorch deploy path (same bf16 matmuls)."""
    f32, bf16 = jnp.float32, jnp.bfloat16
    _, ch, h, w = x_nchw.shape
    fh, fw = h // STRIDE, w // STRIDE
    m = fh * fw
    xp = _patchify(x_nchw[0].astype(bf16), fh, fw, ch)

    def lin(v, wm, bv):
        return jnp.dot(v.astype(bf16), wm.astype(bf16), preferred_element_type=f32) + bv

    feat = jax.nn.relu(lin(xp, params["bb_w"], params["bb_b"]))
    feat = jax.nn.relu(lin(feat, params["nk_w"], params["nk_b"]))
    cls_f = jax.nn.relu(lin(feat, params["hc_w"], params["hc_b"]))
    reg_f = jax.nn.relu(lin(feat, params["hr_w"], params["hr_b"]))
    obj = lin(reg_f, params["obj_w"], params["obj_b"]).reshape(m * NUM_ANCHORS, 1)
    cls = lin(cls_f, params["cls_w"], params["cls_b"]).reshape(m * NUM_ANCHORS, NUM_CLASSES)
    reg = lin(reg_f, params["reg_w"], params["reg_b"]).reshape(m * NUM_ANCHORS, 4)

    ys, xs = jnp.meshgrid(jnp.arange(fh), jnp.arange(fw), indexing="ij")
    a_xy = jnp.stack([xs, ys], -1).astype(f32).reshape(m, 1, 2)
    a_xy = jnp.broadcast_to(a_xy, (m, NUM_ANCHORS, 2)).reshape(-1, 2)
    a_wh = jnp.broadcast_to(jnp.asarray(ANCHOR_SIZE, f32)[None],
                            (m, NUM_ANCHORS, 2)).reshape(-1, 2)

    ctr = (jax.nn.sigmoid(reg[:, :2]) + a_xy) * STRIDE
    wh = jnp.exp(reg[:, 2:]) * a_wh
    scores = jnp.sqrt(jax.nn.sigmoid(obj) * jax.nn.sigmoid(cls))
    return jnp.concatenate([ctr - 0.5 * wh, ctr + 0.5 * wh, scores], axis=-1)


# --------------------------------- main ---------------------------------------
if __name__ == "__main__":
    kx, kx2, kp = jax.random.split(jax.random.PRNGKey(0), 3)
    params = init_params(kp)
    fused = fuse_params(params)

    # small single-tile case (2x2 feature map)
    x = jax.random.normal(kx, (2, 3, 64, 64), jnp.float32)          # NCHW
    out = yolov2_deploy_forward(fused, x)
    jax.block_until_ready(out)
    m = (64 // STRIDE) * (64 // STRIDE)
    assert out.shape == (m * NUM_ANCHORS, OUT_PER_ANCHOR), out.shape
    assert bool(jnp.all(jnp.isfinite(out)))
    ref = yolov2_reference(params, x)
    assert bool(jnp.allclose(out, ref, rtol=5e-3, atol=5e-3)), (
        float(jnp.max(jnp.abs(out - ref))))

    # multi-step grid case (8x4 feature map, tm=16 -> 2 grid steps)
    x2 = jax.random.normal(kx2, (1, 3, 256, 128), jnp.float32)
    out2 = yolov2_deploy_forward(fused, x2, tm=16)
    jax.block_until_ready(out2)
    ref2 = yolov2_reference(params, x2)
    assert bool(jnp.all(jnp.isfinite(out2)))
    assert bool(jnp.allclose(out2, ref2, rtol=5e-3, atol=5e-3)), (
        float(jnp.max(jnp.abs(out2 - ref2))))

    print("KERNEL_OK")
</pallas_src>

<mosaic_0001>
module attributes {stable_mosaic.version = 11 : i64} {
  func.func @_yolov2_fused_kernel(%arg0: i32, %arg1: memref<16x3072xbf16, #tpu.memory_space<vmem>>, %arg2: memref<3072x128xbf16, #tpu.memory_space<vmem>>, %arg3: memref<1x128xf32, #tpu.memory_space<vmem>>, %arg4: memref<128x128xbf16, #tpu.memory_space<vmem>>, %arg5: memref<1x128xf32, #tpu.memory_space<vmem>>, %arg6: memref<128x256xbf16, #tpu.memory_space<vmem>>, %arg7: memref<1x256xf32, #tpu.memory_space<vmem>>, %arg8: memref<256x128xbf16, #tpu.memory_space<vmem>>, %arg9: memref<1x128xf32, #tpu.memory_space<vmem>>, %arg10: memref<8x128xf32, #tpu.memory_space<vmem>>, %arg11: memref<128x128xf32, #tpu.memory_space<vmem>>, %arg12: memref<16x128xf32, #tpu.memory_space<vmem>>) attributes {dimension_semantics = [#tpu.dimension_semantics<parallel>], iteration_bounds = array<i64: 1>, scalar_prefetch = 0 : i64, scratch_operands = 0 : i64, tpu.core_type = #tpu.core_type<tc>, window_params = [{transform_indices = @transform_0, window_bounds = array<i64: 16, 3072>}, {pipeline_mode = #tpu.pipeline_mode<synchronous>, transform_indices = @transform_1, window_bounds = array<i64: 3072, 128>}, {pipeline_mode = #tpu.pipeline_mode<synchronous>, transform_indices = @transform_2, window_bounds = array<i64: 1, 128>}, {pipeline_mode = #tpu.pipeline_mode<synchronous>, transform_indices = @transform_3, window_bounds = array<i64: 128, 128>}, {pipeline_mode = #tpu.pipeline_mode<synchronous>, transform_indices = @transform_4, window_bounds = array<i64: 1, 128>}, {pipeline_mode = #tpu.pipeline_mode<synchronous>, transform_indices = @transform_5, window_bounds = array<i64: 128, 256>}, {pipeline_mode = #tpu.pipeline_mode<synchronous>, transform_indices = @transform_6, window_bounds = array<i64: 1, 256>}, {pipeline_mode = #tpu.pipeline_mode<synchronous>, transform_indices = @transform_7, window_bounds = array<i64: 256, 128>}, {pipeline_mode = #tpu.pipeline_mode<synchronous>, transform_indices = @transform_8, window_bounds = array<i64: 1, 128>}, {pipeline_mode = #tpu.pipeline_mode<synchronous>, transform_indices = @transform_9, window_bounds = array<i64: 8, 128>}, {pipeline_mode = #tpu.pipeline_mode<synchronous>, transform_indices = @transform_10, window_bounds = array<i64: 128, 128>}, {transform_indices = @transform_11, window_bounds = array<i64: 16, 128>}]} {
    %c0 = arith.constant 0 : index
    %c0_0 = arith.constant 0 : index
    %0 = vector.load %arg1[%c0, %c0_0] : memref<16x3072xbf16, #tpu.memory_space<vmem>>, vector<16x3072xbf16>
    %c0_1 = arith.constant 0 : index
    %c0_2 = arith.constant 0 : index
    %1 = vector.load %arg2[%c0_1, %c0_2] : memref<3072x128xbf16, #tpu.memory_space<vmem>>, vector<3072x128xbf16>
    %cst = arith.constant dense<0.000000e+00> : vector<16x128xf32>
    %2 = tpu.matmul %0, %1, %cst {dimension_numbers = #tpu.dot_dimension_numbers<[1], [0], [0], [1], [0, 0, 1, 1], [], []>} : vector<16x3072xbf16>, vector<3072x128xbf16>, vector<16x128xf32> -> vector<16x128xf32>
    %c0_3 = arith.constant 0 : index
    %c0_4 = arith.constant 0 : index
    %3 = vector.load %arg3[%c0_3, %c0_4] : memref<1x128xf32, #tpu.memory_space<vmem>>, vector<1x128xf32>
    %4 = vector.broadcast %3 : vector<1x128xf32> to vector<16x128xf32>
    %5 = arith.addf %2, %4 : vector<16x128xf32>
    %cst_5 = arith.constant 0.000000e+00 : f32
    %6 = vector.broadcast %cst_5 : f32 to vector<16x128xf32>
    %7 = arith.maximumf %5, %6 : vector<16x128xf32>
    %8 = arith.truncf %7 : vector<16x128xf32> to vector<16x128xbf16>
    %c0_6 = arith.constant 0 : index
    %c0_7 = arith.constant 0 : index
    %9 = vector.load %arg4[%c0_6, %c0_7] : memref<128x128xbf16, #tpu.memory_space<vmem>>, vector<128x128xbf16>
    %cst_8 = arith.constant dense<0.000000e+00> : vector<16x128xf32>
    %10 = tpu.matmul %8, %9, %cst_8 {dimension_numbers = #tpu.dot_dimension_numbers<[1], [0], [0], [1], [0, 0, 1, 1], [], []>} : vector<16x128xbf16>, vector<128x128xbf16>, vector<16x128xf32> -> vector<16x128xf32>
    %c0_9 = arith.constant 0 : index
    %c0_10 = arith.constant 0 : index
    %11 = vector.load %arg5[%c0_9, %c0_10] : memref<1x128xf32, #tpu.memory_space<vmem>>, vector<1x128xf32>
    %12 = vector.broadcast %11 : vector<1x128xf32> to vector<16x128xf32>
    %13 = arith.addf %10, %12 : vector<16x128xf32>
    %cst_11 = arith.constant 0.000000e+00 : f32
    %14 = vector.broadcast %cst_11 : f32 to vector<16x128xf32>
    %15 = arith.maximumf %13, %14 : vector<16x128xf32>
    %16 = arith.truncf %15 : vector<16x128xf32> to vector<16x128xbf16>
    %c0_12 = arith.constant 0 : index
    %c0_13 = arith.constant 0 : index
    %17 = vector.load %arg6[%c0_12, %c0_13] : memref<128x256xbf16, #tpu.memory_space<vmem>>, vector<128x256xbf16>
    %cst_14 = arith.constant dense<0.000000e+00> : vector<16x256xf32>
    %18 = tpu.matmul %16, %17, %cst_14 {dimension_numbers = #tpu.dot_dimension_numbers<[1], [0], [0], [1], [0, 0, 1, 1], [], []>} : vector<16x128xbf16>, vector<128x256xbf16>, vector<16x256xf32> -> vector<16x256xf32>
    %c0_15 = arith.constant 0 : index
    %c0_16 = arith.constant 0 : index
    %19 = vector.load %arg7[%c0_15, %c0_16] : memref<1x256xf32, #tpu.memory_space<vmem>>, vector<1x256xf32>
    %20 = vector.broadcast %19 : vector<1x256xf32> to vector<16x256xf32>
    %21 = arith.addf %18, %20 : vector<16x256xf32>
    %cst_17 = arith.constant 0.000000e+00 : f32
    %22 = vector.broadcast %cst_17 : f32 to vector<16x256xf32>
    %23 = arith.maximumf %21, %22 : vector<16x256xf32>
    %24 = arith.truncf %23 : vector<16x256xf32> to vector<16x256xbf16>
    %c0_18 = arith.constant 0 : index
    %c0_19 = arith.constant 0 : index
    %25 = vector.load %arg8[%c0_18, %c0_19] : memref<256x128xbf16, #tpu.memory_space<vmem>>, vector<256x128xbf16>
    %cst_20 = arith.constant dense<0.000000e+00> : vector<16x128xf32>
    %26 = tpu.matmul %24, %25, %cst_20 {dimension_numbers = #tpu.dot_dimension_numbers<[1], [0], [0], [1], [0, 0, 1, 1], [], []>} : vector<16x256xbf16>, vector<256x128xbf16>, vector<16x128xf32> -> vector<16x128xf32>
    %c0_21 = arith.constant 0 : index
    %c0_22 = arith.constant 0 : index
    %27 = vector.load %arg9[%c0_21, %c0_22] : memref<1x128xf32, #tpu.memory_space<vmem>>, vector<1x128xf32>
    %28 = vector.broadcast %27 : vector<1x128xf32> to vector<16x128xf32>
    %29 = arith.addf %26, %28 : vector<16x128xf32>
    %c0_23 = arith.constant 0 : index
    %c0_24 = arith.constant 0 : index
    %30 = vector.load %arg10[%c0_23, %c0_24] : memref<8x128xf32, #tpu.memory_space<vmem>>, vector<8x128xf32>
    %31 = vector.extract_strided_slice %30 {offsets = [0, 0], sizes = [1, 128], strides = [1, 1]} : vector<8x128xf32> to vector<1x128xf32>
    %32 = vector.extract_strided_slice %30 {offsets = [1, 0], sizes = [1, 128], strides = [1, 1]} : vector<8x128xf32> to vector<1x128xf32>
    %33 = vector.extract_strided_slice %30 {offsets = [2, 0], sizes = [1, 128], strides = [1, 1]} : vector<8x128xf32> to vector<1x128xf32>
    %34 = vector.extract_strided_slice %30 {offsets = [3, 0], sizes = [1, 128], strides = [1, 1]} : vector<8x128xf32> to vector<1x128xf32>
    %35 = vector.extract_strided_slice %30 {offsets = [4, 0], sizes = [1, 128], strides = [1, 1]} : vector<8x128xf32> to vector<1x128xf32>
    %c16_i32 = arith.constant 16 : i32
    %36 = arith.muli %arg0, %c16_i32 : i32
    %37 = tpu.iota {dimensions = array<i32: 0>} : vector<16x128xi32>
    %38 = vector.broadcast %36 : i32 to vector<16x128xi32>
    %39 = arith.addi %37, %38 : vector<16x128xi32>
    %40 = arith.sitofp %39 : vector<16x128xi32> to vector<16x128xf32>
    %cst_25 = arith.constant 5.000000e-01 : f32
    %41 = vector.broadcast %cst_25 : f32 to vector<16x128xf32>
    %42 = arith.addf %40, %41 : vector<16x128xf32>
    %cst_26 = arith.constant 2.000000e+00 : f32
    %43 = vector.broadcast %cst_26 : f32 to vector<16x128xf32>
    %44 = arith.divf %42, %43 : vector<16x128xf32>
    %45 = math.floor %44 : vector<16x128xf32>
    %cst_27 = arith.constant 2.000000e+00 : f32
    %46 = vector.broadcast %cst_27 : f32 to vector<16x128xf32>
    %47 = arith.mulf %45, %46 : vector<16x128xf32>
    %48 = arith.subf %40, %47 : vector<16x128xf32>
    %49 = arith.negf %29 : vector<16x128xf32>
    %50 = math.exp %49 : vector<16x128xf32>
    %cst_28 = arith.constant 1.000000e+00 : f32
    %51 = vector.broadcast %cst_28 : f32 to vector<16x128xf32>
    %52 = arith.addf %51, %50 : vector<16x128xf32>
    %53 = arith.divf %51, %52 : vector<16x128xf32>
    %54 = vector.broadcast %32 : vector<1x128xf32> to vector<16x128xf32>
    %55 = arith.mulf %29, %54 : vector<16x128xf32>
    %56 = math.exp %55 : vector<16x128xf32>
    %57 = vector.broadcast %33 : vector<1x128xf32> to vector<16x128xf32>
    %58 = arith.mulf %56, %57 : vector<16x128xf32>
    %59 = vector.broadcast %31 : vector<1x128xf32> to vector<16x128xf32>
    %60 = arith.mulf %53, %59 : vector<16x128xf32>
    %cst_29 = arith.constant 0.000000e+00 : f32
    %61 = vector.broadcast %cst_29 : f32 to vector<16x2xf32>
    %62 = vector.extract_strided_slice %60 {offsets = [0, 0], sizes = [16, 126], strides = [1, 1]} : vector<16x128xf32> to vector<16x126xf32>
    %63 = tpu.concatenate %61, %62 in 1 : vector<16x2xf32>, vector<16x126xf32> -> vector<16x128xf32>
    %64 = arith.addf %60, %63 : vector<16x128xf32>
    %65 = vector.broadcast %34 : vector<1x128xf32> to vector<16x128xf32>
    %66 = arith.mulf %48, %65 : vector<16x128xf32>
    %67 = arith.addf %64, %66 : vector<16x128xf32>
    %68 = vector.broadcast %35 : vector<1x128xf32> to vector<16x128xf32>
    %69 = arith.mulf %45, %68 : vector<16x128xf32>
    %70 = arith.addf %67, %69 : vector<16x128xf32>
    %71 = arith.addf %70, %58 : vector<16x128xf32>
    %cst_30 = arith.constant 0.000000e+00 : f32
    %72 = vector.broadcast %cst_30 : f32 to vector<16x2xf32>
    %73 = vector.extract_strided_slice %58 {offsets = [0, 2], sizes = [16, 126], strides = [1, 1]} : vector<16x128xf32> to vector<16x126xf32>
    %74 = tpu.concatenate %73, %72 in 1 : vector<16x126xf32>, vector<16x2xf32> -> vector<16x128xf32>
    %75 = arith.subf %71, %74 : vector<16x128xf32>
    %c0_31 = arith.constant 0 : index
    %c0_32 = arith.constant 0 : index
    %76 = vector.load %arg11[%c0_31, %c0_32] : memref<128x128xf32, #tpu.memory_space<vmem>>, vector<128x128xf32>
    %cst_33 = arith.constant dense<0.000000e+00> : vector<16x128xf32>
    %77 = tpu.matmul %53, %76, %cst_33 {dimension_numbers = #tpu.dot_dimension_numbers<[1], [0], [0], [1], [0, 0, 1, 1], [], []>} : vector<16x128xf32>, vector<128x128xf32>, vector<16x128xf32> -> vector<16x128xf32>
    %78 = arith.mulf %77, %53 : vector<16x128xf32>
    %79 = math.sqrt %78 : vector<16x128xf32>
    %80 = arith.addf %75, %79 : vector<16x128xf32>
    %c0_34 = arith.constant 0 : index
    %c0_35 = arith.constant 0 : index
    %81 = vector.load %arg12[%c0_34, %c0_35] : memref<16x128xf32, #tpu.memory_space<vmem>>, vector<16x128xf32>
    tpu.vector_store %arg12[%c0_34, %c0_35], %80 {strides = array<i32>} : memref<16x128xf32, #tpu.memory_space<vmem>>, vector<16x128xf32>,
    return
  }
  func.func @transform_0(%arg0: i32) -> (i32, i32) {
    %c0_i32 = arith.constant 0 : i32
    %c0_i32_0 = arith.constant 0 : i32
    return %arg0, %c0_i32 : i32, i32
  }
  func.func @transform_1(%arg0: i32) -> (i32, i32) {
    %c0_i32 = arith.constant 0 : i32
    %c0_i32_0 = arith.constant 0 : i32
    %c0_i32_1 = arith.constant 0 : i32
    return %c0_i32, %c0_i32_0 : i32, i32
  }
  func.func @transform_2(%arg0: i32) -> (i32, i32) {
    %c0_i32 = arith.constant 0 : i32
    %c0_i32_0 = arith.constant 0 : i32
    %c0_i32_1 = arith.constant 0 : i32
    return %c0_i32, %c0_i32_0 : i32, i32
  }
  func.func @transform_3(%arg0: i32) -> (i32, i32) {
    %c0_i32 = arith.constant 0 : i32
    %c0_i32_0 = arith.constant 0 : i32
    %c0_i32_1 = arith.constant 0 : i32
    return %c0_i32, %c0_i32_0 : i32, i32
  }
  func.func @transform_4(%arg0: i32) -> (i32, i32) {
    %c0_i32 = arith.constant 0 : i32
    %c0_i32_0 = arith.constant 0 : i32
    %c0_i32_1 = arith.constant 0 : i32
    return %c0_i32, %c0_i32_0 : i32, i32
  }
  func.func @transform_5(%arg0: i32) -> (i32, i32) {
    %c0_i32 = arith.constant 0 : i32
    %c0_i32_0 = arith.constant 0 : i32
    %c0_i32_1 = arith.constant 0 : i32
    return %c0_i32, %c0_i32_0 : i32, i32
  }
  func.func @transform_6(%arg0: i32) -> (i32, i32) {
    %c0_i32 = arith.constant 0 : i32
    %c0_i32_0 = arith.constant 0 : i32
    %c0_i32_1 = arith.constant 0 : i32
    return %c0_i32, %c0_i32_0 : i32, i32
  }
  func.func @transform_7(%arg0: i32) -> (i32, i32) {
    %c0_i32 = arith.constant 0 : i32
    %c0_i32_0 = arith.constant 0 : i32
    %c0_i32_1 = arith.constant 0 : i32
    return %c0_i32, %c0_i32_0 : i32, i32
  }
  func.func @transform_8(%arg0: i32) -> (i32, i32) {
    %c0_i32 = arith.constant 0 : i32
    %c0_i32_0 = arith.constant 0 : i32
    %c0_i32_1 = arith.constant 0 : i32
    return %c0_i32, %c0_i32_0 : i32, i32
  }
  func.func @transform_9(%arg0: i32) -> (i32, i32) {
    %c0_i32 = arith.constant 0 : i32
    %c0_i32_0 = arith.constant 0 : i32
    %c0_i32_1 = arith.constant 0 : i32
    return %c0_i32, %c0_i32_0 : i32, i32
  }
  func.func @transform_10(%arg0: i32) -> (i32, i32) {
    %c0_i32 = arith.constant 0 : i32
    %c0_i32_0 = arith.constant 0 : i32
    %c0_i32_1 = arith.constant 0 : i32
    return %c0_i32, %c0_i32_0 : i32, i32
  }
  func.func @transform_11(%arg0: i32) -> (i32, i32) {
    %c0_i32 = arith.constant 0 : i32
    %c0_i32_0 = arith.constant 0 : i32
    return %arg0, %c0_i32 : i32, i32
  }
}

</mosaic_0001>

<llo_original>
// kernel: yolov2_deploy_forward.1
$region0: #{yolov2_deploy_forward.1}
  #allocation0 [shape = 'u32[]', space=smem, size = 0x4, offset = 0x4, fixed_abs, tag = 'smem constant byte address 0x4 - core index']
  #allocation1 [shape = 'u32[72,128]{1,0:T(1,128)}', space=vmem, size = 0x9000, scoped, tag = 'internal scratch']
  %s0 = inlined_call_operand.vmem [shape: bf16[16,3072], index: 0, kind: input, shape index: {}]
  %s1 = inlined_call_operand.vmem [shape: bf16[3072,128], index: 1, kind: input, shape index: {}]
  %s2 = inlined_call_operand.vmem [shape: f32[1,128], index: 2, kind: input, shape index: {}]
  %s3 = inlined_call_operand.vmem [shape: bf16[128,128], index: 3, kind: input, shape index: {}]
  %s4 = inlined_call_operand.vmem [shape: f32[1,128], index: 4, kind: input, shape index: {}]
  %s5 = inlined_call_operand.vmem [shape: bf16[128,256], index: 5, kind: input, shape index: {}]
  %s6 = inlined_call_operand.vmem [shape: f32[1,256], index: 6, kind: input, shape index: {}]
  %s7 = inlined_call_operand.vmem [shape: bf16[256,128], index: 7, kind: input, shape index: {}]
  %s8 = inlined_call_operand.vmem [shape: f32[1,128], index: 8, kind: input, shape index: {}]
  %s9 = inlined_call_operand.vmem [shape: f32[8,128], index: 9, kind: input, shape index: {}]
  %s10 = inlined_call_operand.vmem [shape: f32[128,128], index: 10, kind: input, shape index: {}]
  %s11 = inlined_call_operand.vmem [shape: f32[16,128], index: 11, kind: output, shape index: {}]
  %s12 = sld [smem:[#allocation0]]
  $region54: #{yolov2_deploy_forward.1} parent=0
    _
  %s14 = ssub.s32 1, %s12
  %s15 = scalar_select 0, %s14, %s12
  // Predicated region
  $region2: #{yolov2_deploy_forward.1} parent=0 // pred_check
    _
  $region3: #{yolov2_deploy_forward.1} parent=0 // pred_check_branch
    %17 = sbr.rel (0) target = $region5
  $region4: #{yolov2_deploy_forward.1} parent=0 // pred_region
    _
  $region5: #{yolov2_deploy_forward.1} parent=0 // pred_fallthru
    _
  // Predicated region
  $region6: #{yolov2_deploy_forward.1} parent=0 // pred_check
    _
  $region7: #{yolov2_deploy_forward.1} parent=0 // pred_check_branch
    %19 = sbr.rel (0) target = $region9
  $region8: #{yolov2_deploy_forward.1} parent=0 // pred_region
    _
  $region9: #{yolov2_deploy_forward.1} parent=0 // pred_fallthru
    _
  // Predicated region
  $region10: #{yolov2_deploy_forward.1} parent=0 // pred_check
    _
  $region11: #{yolov2_deploy_forward.1} parent=0 // pred_check_branch
    %21 = sbr.rel (0) target = $region13
  $region12: #{yolov2_deploy_forward.1} parent=0 // pred_region
    _
  $region13: #{yolov2_deploy_forward.1} parent=0 // pred_fallthru
    _
  // Predicated region
  $region14: #{yolov2_deploy_forward.1} parent=0 // pred_check
    _
  $region15: #{yolov2_deploy_forward.1} parent=0 // pred_check_branch
    %23 = sbr.rel (0) target = $region17
  $region16: #{yolov2_deploy_forward.1} parent=0 // pred_region
    _
  $region17: #{yolov2_deploy_forward.1} parent=0 // pred_fallthru
    _
  // Predicated region
  $region18: #{yolov2_deploy_forward.1} parent=0 // pred_check
    _
  $region19: #{yolov2_deploy_forward.1} parent=0 // pred_check_branch
    %25 = sbr.rel (0) target = $region21
  $region20: #{yolov2_deploy_forward.1} parent=0 // pred_region
    _
  $region21: #{yolov2_deploy_forward.1} parent=0 // pred_fallthru
    _
  // Predicated region
  $region22: #{yolov2_deploy_forward.1} parent=0 // pred_check
    _
  $region23: #{yolov2_deploy_forward.1} parent=0 // pred_check_branch
    %27 = sbr.rel (0) target = $region25
  $region24: #{yolov2_deploy_forward.1} parent=0 // pred_region
    _
  $region25: #{yolov2_deploy_forward.1} parent=0 // pred_fallthru
    _
  // Predicated region
  $region26: #{yolov2_deploy_forward.1} parent=0 // pred_check
    _
  $region27: #{yolov2_deploy_forward.1} parent=0 // pred_check_branch
    %29 = sbr.rel (0) target = $region29
  $region28: #{yolov2_deploy_forward.1} parent=0 // pred_region
    _
  $region29: #{yolov2_deploy_forward.1} parent=0 // pred_fallthru
    _
  // Predicated region
  $region30: #{yolov2_deploy_forward.1} parent=0 // pred_check
    _
  $region31: #{yolov2_deploy_forward.1} parent=0 // pred_check_branch
    %31 = sbr.rel (0) target = $region33
  $region32: #{yolov2_deploy_forward.1} parent=0 // pred_region
    _
  $region33: #{yolov2_deploy_forward.1} parent=0 // pred_fallthru
    _
  // Predicated region
  $region34: #{yolov2_deploy_forward.1} parent=0 // pred_check
    _
  $region35: #{yolov2_deploy_forward.1} parent=0 // pred_check_branch
    %33 = sbr.rel (0) target = $region37
  $region36: #{yolov2_deploy_forward.1} parent=0 // pred_region
    _
  $region37: #{yolov2_deploy_forward.1} parent=0 // pred_fallthru
    _
  // Predicated region
  $region38: #{yolov2_deploy_forward.1} parent=0 // pred_check
    _
  $region39: #{yolov2_deploy_forward.1} parent=0 // pred_check_branch
    %35 = sbr.rel (0) target = $region41
  $region40: #{yolov2_deploy_forward.1} parent=0 // pred_region
    _
  $region41: #{yolov2_deploy_forward.1} parent=0 // pred_fallthru
    _
  // Predicated region
  $region42: #{yolov2_deploy_forward.1} parent=0 // pred_check
    _
  $region43: #{yolov2_deploy_forward.1} parent=0 // pred_check_branch
    %37 = sbr.rel (0) target = $region45
  $region44: #{yolov2_deploy_forward.1} parent=0 // pred_region
    _
  $region45: #{yolov2_deploy_forward.1} parent=0 // pred_fallthru
    _
  %v38 = vld [vmem:[%s0] sm:$0xff]
  %v39 = vld [vmem:[%s0 + $0x8] sm:$0xff]
  %v40 = vld [vmem:[%s0 + $0x10] sm:$0xff]
  %v41 = vld [vmem:[%s0 + $0x18] sm:$0xff]
  %v42 = vld [vmem:[%s0 + $0x20] sm:$0xff]
  %v43 = vld [vmem:[%s0 + $0x28] sm:$0xff]
  %v44 = vld [vmem:[%s0 + $0x30] sm:$0xff]
  %v45 = vld [vmem:[%s0 + $0x38] sm:$0xff]
  %v46 = vld [vmem:[%s0 + $0x40] sm:$0xff]
  %v47 = vld [vmem:[%s0 + $0x48] sm:$0xff]
  %v48 = vld [vmem:[%s0 + $0x50] sm:$0xff]
  %v49 = vld [vmem:[%s0 + $0x58] sm:$0xff]
  %v50 = vld [vmem:[%s0 + $0x60] sm:$0xff]
  %v51 = vld [vmem:[%s0 + $0x68] sm:$0xff]
  %v52 = vld [vmem:[%s0 + $0x70] sm:$0xff]
  %v53 = vld [vmem:[%s0 + $0x78] sm:$0xff]
  %v54 = vld [vmem:[%s0 + $0x80] sm:$0xff]
  %v55 = vld [vmem:[%s0 + $0x88] sm:$0xff]
  %v56 = vld [vmem:[%s0 + $0x90] sm:$0xff]
  %v57 = vld [vmem:[%s0 + $0x98] sm:$0xff]
  %v58 = vld [vmem:[%s0 + $0xa0] sm:$0xff]
  %v59 = vld [vmem:[%s0 + $0xa8] sm:$0xff]
  %v60 = vld [vmem:[%s0 + $0xb0] sm:$0xff]
  %v61 = vld [vmem:[%s0 + $0xb8] sm:$0xff]
  %v62 = vld [vmem:[%s1] sm:$0xf]
  %v63 = vld [vmem:[%s1 + $0x4] sm:$0xf]
  %v64 = vld [vmem:[%s1 + $0x8] sm:$0xf]
  %v65 = vld [vmem:[%s1 + $0xc] sm:$0xf]
  %v66 = vld [vmem:[%s1 + $0x10] sm:$0xf]
  %v67 = vld [vmem:[%s1 + $0x14] sm:$0xf]
  %v68 = vld [vmem:[%s1 + $0x18] sm:$0xf]
  %v69 = vld [vmem:[%s1 + $0x1c] sm:$0xf]
  %v70 = vld [vmem:[%s1 + $0x20] sm:$0xf]
  %v71 = vld [vmem:[%s1 + $0x24] sm:$0xf]
  %v72 = vld [vmem:[%s1 + $0x28] sm:$0xf]
  %v73 = vld [vmem:[%s1 + $0x2c] sm:$0xf]
  %v74 = vld [vmem:[%s1 + $0x30] sm:$0xf]
  %v75 = vld [vmem:[%s1 + $0x34] sm:$0xf]
  %v76 = vld [vmem:[%s1 + $0x38] sm:$0xf]
  %v77 = vld [vmem:[%s1 + $0x3c] sm:$0xf]
  %v78 = vld [vmem:[%s1 + $0x40] sm:$0xf]
  %v79 = vld [vmem:[%s1 + $0x44] sm:$0xf]
  %v80 = vld [vmem:[%s1 + $0x48] sm:$0xf]
  %v81 = vld [vmem:[%s1 + $0x4c] sm:$0xf]
  %v82 = vld [vmem:[%s1 + $0x50] sm:$0xf]
  %v83 = vld [vmem:[%s1 + $0x54] sm:$0xf]
  %v84 = vld [vmem:[%s1 + $0x58] sm:$0xf]
  %v85 = vld [vmem:[%s1 + $0x5c] sm:$0xf]
  %v86 = vld [vmem:[%s1 + $0x60] sm:$0xf]
  %v87 = vld [vmem:[%s1 + $0x64] sm:$0xf]
  %v88 = vld [vmem:[%s1 + $0x68] sm:$0xf]
  %v89 = vld [vmem:[%s1 + $0x6c] sm:$0xf]
  %v90 = vld [vmem:[%s1 + $0x70] sm:$0xf]
  %v91 = vld [vmem:[%s1 + $0x74] sm:$0xf]
  %v92 = vld [vmem:[%s1 + $0x78] sm:$0xf]
  %v93 = vld [vmem:[%s1 + $0x7c] sm:$0xf]
  %v94 = vld [vmem:[%s1 + $0x80] sm:$0xf]
  %v95 = vld [vmem:[%s1 + $0x84] sm:$0xf]
  %v96 = vld [vmem:[%s1 + $0x88] sm:$0xf]
  %v97 = vld [vmem:[%s1 + $0x8c] sm:$0xf]
  %v98 = vld [vmem:[%s1 + $0x90] sm:$0xf]
  %v99 = vld [vmem:[%s1 + $0x94] sm:$0xf]
  %v100 = vld [vmem:[%s1 + $0x98] sm:$0xf]
  %v101 = vld [vmem:[%s1 + $0x9c] sm:$0xf]
  %v102 = vld [vmem:[%s1 + $0xa0] sm:$0xf]
  %v103 = vld [vmem:[%s1 + $0xa4] sm:$0xf]
  %v104 = vld [vmem:[%s1 + $0xa8] sm:$0xf]
  %v105 = vld [vmem:[%s1 + $0xac] sm:$0xf]
  %v106 = vld [vmem:[%s1 + $0xb0] sm:$0xf]
  %v107 = vld [vmem:[%s1 + $0xb4] sm:$0xf]
  %v108 = vld [vmem:[%s1 + $0xb8] sm:$0xf]
  %v109 = vld [vmem:[%s1 + $0xbc] sm:$0xf]
  %v110 = vld [vmem:[%s1 + $0xc0] sm:$0xf]
  %v111 = vld [vmem:[%s1 + $0xc4] sm:$0xf]
  %v112 = vld [vmem:[%s1 + $0xc8] sm:$0xf]
  %v113 = vld [vmem:[%s1 + $0xcc] sm:$0xf]
  %v114 = vld [vmem:[%s1 + $0xd0] sm:$0xf]
  %v115 = vld [vmem:[%s1 + $0xd4] sm:$0xf]
  %v116 = vld [vmem:[%s1 + $0xd8] sm:$0xf]
  %v117 = vld [vmem:[%s1 + $0xdc] sm:$0xf]
  %v118 = vld [vmem:[%s1 + $0xe0] sm:$0xf]
  %v119 = vld [vmem:[%s1 + $0xe4] sm:$0xf]
  %v120 = vld [vmem:[%s1 + $0xe8] sm:$0xf]
  %v121 = vld [vmem:[%s1 + $0xec] sm:$0xf]
  %v122 = vld [vmem:[%s1 + $0xf0] sm:$0xf]
  %v123 = vld [vmem:[%s1 + $0xf4] sm:$0xf]
  %v124 = vld [vmem:[%s1 + $0xf8] sm:$0xf]
  %v125 = vld [vmem:[%s1 + $0xfc] sm:$0xf]
  %v126 = vld [vmem:[%s1 + $0x100] sm:$0xf]
  %v127 = vld [vmem:[%s1 + $0x104] sm:$0xf]
  %v128 = vld [vmem:[%s1 + $0x108] sm:$0xf]
  %v129 = vld [vmem:[%s1 + $0x10c] sm:$0xf]
  %v130 = vld [vmem:[%s1 + $0x110] sm:$0xf]
  %v131 = vld [vmem:[%s1 + $0x114] sm:$0xf]
  %v132 = vld [vmem:[%s1 + $0x118] sm:$0xf]
  %v133 = vld [vmem:[%s1 + $0x11c] sm:$0xf]
  %v134 = vld [vmem:[%s1 + $0x120] sm:$0xf]
  %v135 = vld [vmem:[%s1 + $0x124] sm:$0xf]
  %v136 = vld [vmem:[%s1 + $0x128] sm:$0xf]
  %v137 = vld [vmem:[%s1 + $0x12c] sm:$0xf]
  %v138 = vld [vmem:[%s1 + $0x130] sm:$0xf]
  %v139 = vld [vmem:[%s1 + $0x134] sm:$0xf]
  %v140 = vld [vmem:[%s1 + $0x138] sm:$0xf]
  %v141 = vld [vmem:[%s1 + $0x13c] sm:$0xf]
  %v142 = vld [vmem:[%s1 + $0x140] sm:$0xf]
  %v143 = vld [vmem:[%s1 + $0x144] sm:$0xf]
  %v144 = vld [vmem:[%s1 + $0x148] sm:$0xf]
  %v145 = vld [vmem:[%s1 + $0x14c] sm:$0xf]
  %v146 = vld [vmem:[%s1 + $0x150] sm:$0xf]
  %v147 = vld [vmem:[%s1 + $0x154] sm:$0xf]
  %v148 = vld [vmem:[%s1 + $0x158] sm:$0xf]
  %v149 = vld [vmem:[%s1 + $0x15c] sm:$0xf]
  %v150 = vld [vmem:[%s1 + $0x160] sm:$0xf]
  %v151 = vld [vmem:[%s1 + $0x164] sm:$0xf]
  %v152 = vld [vmem:[%s1 + $0x168] sm:$0xf]
  %v153 = vld [vmem:[%s1 + $0x16c] sm:$0xf]
  %v154 = vld [vmem:[%s1 + $0x170] sm:$0xf]
  %v155 = vld [vmem:[%s1 + $0x174] sm:$0xf]
  %v156 = vld [vmem:[%s1 + $0x178] sm:$0xf]
  %v157 = vld [vmem:[%s1 + $0x17c] sm:$0xf]
  %v158 = vld [vmem:[%s1 + $0x180] sm:$0xf]
  %v159 = vld [vmem:[%s1 + $0x184] sm:$0xf]
  %v160 = vld [vmem:[%s1 + $0x188] sm:$0xf]
  %v161 = vld [vmem:[%s1 + $0x18c] sm:$0xf]
  %v162 = vld [vmem:[%s1 + $0x190] sm:$0xf]
  %v163 = vld [vmem:[%s1 + $0x194] sm:$0xf]
  %v164 = vld [vmem:[%s1 + $0x198] sm:$0xf]
  %v165 = vld [vmem:[%s1 + $0x19c] sm:$0xf]
  %v166 = vld [vmem:[%s1 + $0x1a0] sm:$0xf]
  %v167 = vld [vmem:[%s1 + $0x1a4] sm:$0xf]
  %v168 = vld [vmem:[%s1 + $0x1a8] sm:$0xf]
  %v169 = vld [vmem:[%s1 + $0x1ac] sm:$0xf]
  %v170 = vld [vmem:[%s1 + $0x1b0] sm:$0xf]
  %v171 = vld [vmem:[%s1 + $0x1b4] sm:$0xf]
  %v172 = vld [vmem:[%s1 + $0x1b8] sm:$0xf]
  %v173 = vld [vmem:[%s1 + $0x1bc] sm:$0xf]
  %v174 = vld [vmem:[%s1 + $0x1c0] sm:$0xf]
  %v175 = vld [vmem:[%s1 + $0x1c4] sm:$0xf]
  %v176 = vld [vmem:[%s1 + $0x1c8] sm:$0xf]
  %v177 = vld [vmem:[%s1 + $0x1cc] sm:$0xf]
  %v178 = vld [vmem:[%s1 + $0x1d0] sm:$0xf]
  %v179 = vld [vmem:[%s1 + $0x1d4] sm:$0xf]
  %v180 = vld [vmem:[%s1 + $0x1d8] sm:$0xf]
  %v181 = vld [vmem:[%s1 + $0x1dc] sm:$0xf]
  %v182 = vld [vmem:[%s1 + $0x1e0] sm:$0xf]
  %v183 = vld [vmem:[%s1 + $0x1e4] sm:$0xf]
  %v184 = vld [vmem:[%s1 + $0x1e8] sm:$0xf]
  %v185 = vld [vmem:[%s1 + $0x1ec] sm:$0xf]
  %v186 = vld [vmem:[%s1 + $0x1f0] sm:$0xf]
  %v187 = vld [vmem:[%s1 + $0x1f4] sm:$0xf]
  %v188 = vld [vmem:[%s1 + $0x1f8] sm:$0xf]
  %v189 = vld [vmem:[%s1 + $0x1fc] sm:$0xf]
  %v190 = vld [vmem:[%s1 + $0x200] sm:$0xf]
  %v191 = vld [vmem:[%s1 + $0x204] sm:$0xf]
  %v192 = vld [vmem:[%s1 + $0x208] sm:$0xf]
  %v193 = vld [vmem:[%s1 + $0x20c] sm:$0xf]
  %v194 = vld [vmem:[%s1 + $0x210] sm:$0xf]
  %v195 = vld [vmem:[%s1 + $0x214] sm:$0xf]
  %v196 = vld [vmem:[%s1 + $0x218] sm:$0xf]
  %v197 = vld [vmem:[%s1 + $0x21c] sm:$0xf]
  %v198 = vld [vmem:[%s1 + $0x220] sm:$0xf]
  %v199 = vld [vmem:[%s1 + $0x224] sm:$0xf]
  %v200 = vld [vmem:[%s1 + $0x228] sm:$0xf]
  %v201 = vld [vmem:[%s1 + $0x22c] sm:$0xf]
  %v202 = vld [vmem:[%s1 + $0x230] sm:$0xf]
  %v203 = vld [vmem:[%s1 + $0x234] sm:$0xf]
  %v204 = vld [vmem:[%s1 + $0x238] sm:$0xf]
  %v205 = vld [vmem:[%s1 + $0x23c] sm:$0xf]
  %v206 = vld [vmem:[%s1 + $0x240] sm:$0xf]
  %v207 = vld [vmem:[%s1 + $0x244] sm:$0xf]
  %v208 = vld [vmem:[%s1 + $0x248] sm:$0xf]
  %v209 = vld [vmem:[%s1 + $0x24c] sm:$0xf]
  %v210 = vld [vmem:[%s1 + $0x250] sm:$0xf]
  %v211 = vld [vmem:[%s1 + $0x254] sm:$0xf]
  %v212 = vld [vmem:[%s1 + $0x258] sm:$0xf]
  %v213 = vld [vmem:[%s1 + $0x25c] sm:$0xf]
  %v214 = vld [vmem:[%s1 + $0x260] sm:$0xf]
  %v215 = vld [vmem:[%s1 + $0x264] sm:$0xf]
  %v216 = vld [vmem:[%s1 + $0x268] sm:$0xf]
  %v217 = vld [vmem:[%s1 + $0x26c] sm:$0xf]
  %v218 = vld [vmem:[%s1 + $0x270] sm:$0xf]
  %v219 = vld [vmem:[%s1 + $0x274] sm:$0xf]
  %v220 = vld [vmem:[%s1 + $0x278] sm:$0xf]
  %v221 = vld [vmem:[%s1 + $0x27c] sm:$0xf]
  %v222 = vld [vmem:[%s1 + $0x280] sm:$0xf]
  %v223 = vld [vmem:[%s1 + $0x284] sm:$0xf]
  %v224 = vld [vmem:[%s1 + $0x288] sm:$0xf]
  %v225 = vld [vmem:[%s1 + $0x28c] sm:$0xf]
  %v226 = vld [vmem:[%s1 + $0x290] sm:$0xf]
  %v227 = vld [vmem:[%s1 + $0x294] sm:$0xf]
  %v228 = vld [vmem:[%s1 + $0x298] sm:$0xf]
  %v229 = vld [vmem:[%s1 + $0x29c] sm:$0xf]
  %v230 = vld [vmem:[%s1 + $0x2a0] sm:$0xf]
  %v231 = vld [vmem:[%s1 + $0x2a4] sm:$0xf]
  %v232 = vld [vmem:[%s1 + $0x2a8] sm:$0xf]
  %v233 = vld [vmem:[%s1 + $0x2ac] sm:$0xf]
  %v234 = vld [vmem:[%s1 + $0x2b0] sm:$0xf]
  %v235 = vld [vmem:[%s1 + $0x2b4] sm:$0xf]
  %v236 = vld [vmem:[%s1 + $0x2b8] sm:$0xf]
  %v237 = vld [vmem:[%s1 + $0x2bc] sm:$0xf]
  %v238 = vld [vmem:[%s1 + $0x2c0] sm:$0xf]
  %v239 = vld [vmem:[%s1 + $0x2c4] sm:$0xf]
  %v240 = vld [vmem:[%s1 + $0x2c8] sm:$0xf]
  %v241 = vld [vmem:[%s1 + $0x2cc] sm:$0xf]
  %v242 = vld [vmem:[%s1 + $0x2d0] sm:$0xf]
  %v243 = vld [vmem:[%s1 + $0x2d4] sm:$0xf]
  %v244 = vld [vmem:[%s1 + $0x2d8] sm:$0xf]
  %v245 = vld [vmem:[%s1 + $0x2dc] sm:$0xf]
  %v246 = vld [vmem:[%s1 + $0x2e0] sm:$0xf]
  %v247 = vld [vmem:[%s1 + $0x2e4] sm:$0xf]
  %v248 = vld [vmem:[%s1 + $0x2e8] sm:$0xf]
  %v249 = vld [vmem:[%s1 + $0x2ec] sm:$0xf]
  %v250 = vld [vmem:[%s1 + $0x2f0] sm:$0xf]
  %v251 = vld [vmem:[%s1 + $0x2f4] sm:$0xf]
  %v252 = vld [vmem:[%s1 + $0x2f8] sm:$0xf]
  %v253 = vld [vmem:[%s1 + $0x2fc] sm:$0xf]
  %v254 = vld [vmem:[%s1 + $0x300] sm:$0xf]
  %v255 = vld [vmem:[%s1 + $0x304] sm:$0xf]
  %v256 = vld [vmem:[%s1 + $0x308] sm:$0xf]
  %v257 = vld [vmem:[%s1 + $0x30c] sm:$0xf]
  %v258 = vld [vmem:[%s1 + $0x310] sm:$0xf]
  %v259 = vld [vmem:[%s1 + $0x314] sm:$0xf]
  %v260 = vld [vmem:[%s1 + $0x318] sm:$0xf]
  %v261 = vld [vmem:[%s1 + $0x31c] sm:$0xf]
  %v262 = vld [vmem:[%s1 + $0x320] sm:$0xf]
  %v263 = vld [vmem:[%s1 + $0x324] sm:$0xf]
  %v264 = vld [vmem:[%s1 + $0x328] sm:$0xf]
  %v265 = vld [vmem:[%s1 + $0x32c] sm:$0xf]
  %v266 = vld [vmem:[%s1 + $0x330] sm:$0xf]
  %v267 = vld [vmem:[%s1 + $0x334] sm:$0xf]
  %v268 = vld [vmem:[%s1 + $0x338] sm:$0xf]
  %v269 = vld [vmem:[%s1 + $0x33c] sm:$0xf]
  %v270 = vld [vmem:[%s1 + $0x340] sm:$0xf]
  %v271 = vld [vmem:[%s1 + $0x344] sm:$0xf]
  %v272 = vld [vmem:[%s1 + $0x348] sm:$0xf]
  %v273 = vld [vmem:[%s1 + $0x34c] sm:$0xf]
  %v274 = vld [vmem:[%s1 + $0x350] sm:$0xf]
  %v275 = vld [vmem:[%s1 + $0x354] sm:$0xf]
  %v276 = vld [vmem:[%s1 + $0x358] sm:$0xf]
  %v277 = vld [vmem:[%s1 + $0x35c] sm:$0xf]
  %v278 = vld [vmem:[%s1 + $0x360] sm:$0xf]
  %v279 = vld [vmem:[%s1 + $0x364] sm:$0xf]
  %v280 = vld [vmem:[%s1 + $0x368] sm:$0xf]
  %v281 = vld [vmem:[%s1 + $0x36c] sm:$0xf]
  %v282 = vld [vmem:[%s1 + $0x370] sm:$0xf]
  %v283 = vld [vmem:[%s1 + $0x374] sm:$0xf]
  %v284 = vld [vmem:[%s1 + $0x378] sm:$0xf]
  %v285 = vld [vmem:[%s1 + $0x37c] sm:$0xf]
  %v286 = vld [vmem:[%s1 + $0x380] sm:$0xf]
  %v287 = vld [vmem:[%s1 + $0x384] sm:$0xf]
  %v288 = vld [vmem:[%s1 + $0x388] sm:$0xf]
  %v289 = vld [vmem:[%s1 + $0x38c] sm:$0xf]
  %v290 = vld [vmem:[%s1 + $0x390] sm:$0xf]
  %v291 = vld [vmem:[%s1 + $0x394] sm:$0xf]
  %v292 = vld [vmem:[%s1 + $0x398] sm:$0xf]
  %v293 = vld [vmem:[%s1 + $0x39c] sm:$0xf]
  %v294 = vld [vmem:[%s1 + $0x3a0] sm:$0xf]
  %v295 = vld [vmem:[%s1 + $0x3a4] sm:$0xf]
  %v296 = vld [vmem:[%s1 + $0x3a8] sm:$0xf]
  %v297 = vld [vmem:[%s1 + $0x3ac] sm:$0xf]
  %v298 = vld [vmem:[%s1 + $0x3b0] sm:$0xf]
  %v299 = vld [vmem:[%s1 + $0x3b4] sm:$0xf]
  %v300 = vld [vmem:[%s1 + $0x3b8] sm:$0xf]
  %v301 = vld [vmem:[%s1 + $0x3bc] sm:$0xf]
  %v302 = vld [vmem:[%s1 + $0x3c0] sm:$0xf]
  %v303 = vld [vmem:[%s1 + $0x3c4] sm:$0xf]
  %v304 = vld [vmem:[%s1 + $0x3c8] sm:$0xf]
  %v305 = vld [vmem:[%s1 + $0x3cc] sm:$0xf]
  %v306 = vld [vmem:[%s1 + $0x3d0] sm:$0xf]
  %v307 = vld [vmem:[%s1 + $0x3d4] sm:$0xf]
  %v308 = vld [vmem:[%s1 + $0x3d8] sm:$0xf]
  %v309 = vld [vmem:[%s1 + $0x3dc] sm:$0xf]
  %v310 = vld [vmem:[%s1 + $0x3e0] sm:$0xf]
  %v311 = vld [vmem:[%s1 + $0x3e4] sm:$0xf]
  %v312 = vld [vmem:[%s1 + $0x3e8] sm:$0xf]
  %v313 = vld [vmem:[%s1 + $0x3ec] sm:$0xf]
  %v314 = vld [vmem:[%s1 + $0x3f0] sm:$0xf]
  %v315 = vld [vmem:[%s1 + $0x3f4] sm:$0xf]
  %v316 = vld [vmem:[%s1 + $0x3f8] sm:$0xf]
  %v317 = vld [vmem:[%s1 + $0x3fc] sm:$0xf]
  %v318 = vld [vmem:[%s1 + $0x400] sm:$0xf]
  %v319 = vld [vmem:[%s1 + $0x404] sm:$0xf]
  %v320 = vld [vmem:[%s1 + $0x408] sm:$0xf]
  %v321 = vld [vmem:[%s1 + $0x40c] sm:$0xf]
  %v322 = vld [vmem:[%s1 + $0x410] sm:$0xf]
  %v323 = vld [vmem:[%s1 + $0x414] sm:$0xf]
  %v324 = vld [vmem:[%s1 + $0x418] sm:$0xf]
  %v325 = vld [vmem:[%s1 + $0x41c] sm:$0xf]
  %v326 = vld [vmem:[%s1 + $0x420] sm:$0xf]
  %v327 = vld [vmem:[%s1 + $0x424] sm:$0xf]
  %v328 = vld [vmem:[%s1 + $0x428] sm:$0xf]
  %v329 = vld [vmem:[%s1 + $0x42c] sm:$0xf]
  %v330 = vld [vmem:[%s1 + $0x430] sm:$0xf]
  %v331 = vld [vmem:[%s1 + $0x434] sm:$0xf]
  %v332 = vld [vmem:[%s1 + $0x438] sm:$0xf]
  %v333 = vld [vmem:[%s1 + $0x43c] sm:$0xf]
  %v334 = vld [vmem:[%s1 + $0x440] sm:$0xf]
  %v335 = vld [vmem:[%s1 + $0x444] sm:$0xf]
  %v336 = vld [vmem:[%s1 + $0x448] sm:$0xf]
  %v337 = vld [vmem:[%s1 + $0x44c] sm:$0xf]
  %v338 = vld [vmem:[%s1 + $0x450] sm:$0xf]
  %v339 = vld [vmem:[%s1 + $0x454] sm:$0xf]
  %v340 = vld [vmem:[%s1 + $0x458] sm:$0xf]
  %v341 = vld [vmem:[%s1 + $0x45c] sm:$0xf]
  %v342 = vld [vmem:[%s1 + $0x460] sm:$0xf]
  %v343 = vld [vmem:[%s1 + $0x464] sm:$0xf]
  %v344 = vld [vmem:[%s1 + $0x468] sm:$0xf]
  %v345 = vld [vmem:[%s1 + $0x46c] sm:$0xf]
  %v346 = vld [vmem:[%s1 + $0x470] sm:$0xf]
  %v347 = vld [vmem:[%s1 + $0x474] sm:$0xf]
  %v348 = vld [vmem:[%s1 + $0x478] sm:$0xf]
  %v349 = vld [vmem:[%s1 + $0x47c] sm:$0xf]
  %v350 = vld [vmem:[%s1 + $0x480] sm:$0xf]
  %v351 = vld [vmem:[%s1 + $0x484] sm:$0xf]
  %v352 = vld [vmem:[%s1 + $0x488] sm:$0xf]
  %v353 = vld [vmem:[%s1 + $0x48c] sm:$0xf]
  %v354 = vld [vmem:[%s1 + $0x490] sm:$0xf]
  %v355 = vld [vmem:[%s1 + $0x494] sm:$0xf]
  %v356 = vld [vmem:[%s1 + $0x498] sm:$0xf]
  %v357 = vld [vmem:[%s1 + $0x49c] sm:$0xf]
  %v358 = vld [vmem:[%s1 + $0x4a0] sm:$0xf]
  %v359 = vld [vmem:[%s1 + $0x4a4] sm:$0xf]
  %v360 = vld [vmem:[%s1 + $0x4a8] sm:$0xf]
  %v361 = vld [vmem:[%s1 + $0x4ac] sm:$0xf]
  %v362 = vld [vmem:[%s1 + $0x4b0] sm:$0xf]
  %v363 = vld [vmem:[%s1 + $0x4b4] sm:$0xf]
  %v364 = vld [vmem:[%s1 + $0x4b8] sm:$0xf]
  %v365 = vld [vmem:[%s1 + $0x4bc] sm:$0xf]
  %v366 = vld [vmem:[%s1 + $0x4c0] sm:$0xf]
  %v367 = vld [vmem:[%s1 + $0x4c4] sm:$0xf]
  %v368 = vld [vmem:[%s1 + $0x4c8] sm:$0xf]
  %v369 = vld [vmem:[%s1 + $0x4cc] sm:$0xf]
  %v370 = vld [vmem:[%s1 + $0x4d0] sm:$0xf]
  %v371 = vld [vmem:[%s1 + $0x4d4] sm:$0xf]
  %v372 = vld [vmem:[%s1 + $0x4d8] sm:$0xf]
  %v373 = vld [vmem:[%s1 + $0x4dc] sm:$0xf]
  %v374 = vld [vmem:[%s1 + $0x4e0] sm:$0xf]
  %v375 = vld [vmem:[%s1 + $0x4e4] sm:$0xf]
  %v376 = vld [vmem:[%s1 + $0x4e8] sm:$0xf]
  %v377 = vld [vmem:[%s1 + $0x4ec] sm:$0xf]
  %v378 = vld [vmem:[%s1 + $0x4f0] sm:$0xf]
  %v379 = vld [vmem:[%s1 + $0x4f4] sm:$0xf]
  %v380 = vld [vmem:[%s1 + $0x4f8] sm:$0xf]
  %v381 = vld [vmem:[%s1 + $0x4fc] sm:$0xf]
  %v382 = vld [vmem:[%s1 + $0x500] sm:$0xf]
  %v383 = vld [vmem:[%s1 + $0x504] sm:$0xf]
  %v384 = vld [vmem:[%s1 + $0x508] sm:$0xf]
  %v385 = vld [vmem:[%s1 + $0x50c] sm:$0xf]
  %v386 = vld [vmem:[%s1 + $0x510] sm:$0xf]
  %v387 = vld [vmem:[%s1 + $0x514] sm:$0xf]
  %v388 = vld [vmem:[%s1 + $0x518] sm:$0xf]
  %v389 = vld [vmem:[%s1 + $0x51c] sm:$0xf]
  %v390 = vld [vmem:[%s1 + $0x520] sm:$0xf]
  %v391 = vld [vmem:[%s1 + $0x524] sm:$0xf]
  %v392 = vld [vmem:[%s1 + $0x528] sm:$0xf]
  %v393 = vld [vmem:[%s1 + $0x52c] sm:$0xf]
  %v394 = vld [vmem:[%s1 + $0x530] sm:$0xf]
  %v395 = vld [vmem:[%s1 + $0x534] sm:$0xf]
  %v396 = vld [vmem:[%s1 + $0x538] sm:$0xf]
  %v397 = vld [vmem:[%s1 + $0x53c] sm:$0xf]
  %v398 = vld [vmem:[%s1 + $0x540] sm:$0xf]
  %v399 = vld [vmem:[%s1 + $0x544] sm:$0xf]
  %v400 = vld [vmem:[%s1 + $0x548] sm:$0xf]
  %v401 = vld [vmem:[%s1 + $0x54c] sm:$0xf]
  %v402 = vld [vmem:[%s1 + $0x550] sm:$0xf]
  %v403 = vld [vmem:[%s1 + $0x554] sm:$0xf]
  %v404 = vld [vmem:[%s1 + $0x558] sm:$0xf]
  %v405 = vld [vmem:[%s1 + $0x55c] sm:$0xf]
  %v406 = vld [vmem:[%s1 + $0x560] sm:$0xf]
  %v407 = vld [vmem:[%s1 + $0x564] sm:$0xf]
  %v408 = vld [vmem:[%s1 + $0x568] sm:$0xf]
  %v409 = vld [vmem:[%s1 + $0x56c] sm:$0xf]
  %v410 = vld [vmem:[%s1 + $0x570] sm:$0xf]
  %v411 = vld [vmem:[%s1 + $0x574] sm:$0xf]
  %v412 = vld [vmem:[%s1 + $0x578] sm:$0xf]
  %v413 = vld [vmem:[%s1 + $0x57c] sm:$0xf]
  %v414 = vld [vmem:[%s1 + $0x580] sm:$0xf]
  %v415 = vld [vmem:[%s1 + $0x584] sm:$0xf]
  %v416 = vld [vmem:[%s1 + $0x588] sm:$0xf]
  %v417 = vld [vmem:[%s1 + $0x58c] sm:$0xf]
  %v418 = vld [vmem:[%s1 + $0x590] sm:$0xf]
  %v419 = vld [vmem:[%s1 + $0x594] sm:$0xf]
  %v420 = vld [vmem:[%s1 + $0x598] sm:$0xf]
  %v421 = vld [vmem:[%s1 + $0x59c] sm:$0xf]
  %v422 = vld [vmem:[%s1 + $0x5a0] sm:$0xf]
  %v423 = vld [vmem:[%s1 + $0x5a4] sm:$0xf]
  %v424 = vld [vmem:[%s1 + $0x5a8] sm:$0xf]
  %v425 = vld [vmem:[%s1 + $0x5ac] sm:$0xf]
  %v426 = vld [vmem:[%s1 + $0x5b0] sm:$0xf]
  %v427 = vld [vmem:[%s1 + $0x5b4] sm:$0xf]
  %v428 = vld [vmem:[%s1 + $0x5b8] sm:$0xf]
  %v429 = vld [vmem:[%s1 + $0x5bc] sm:$0xf]
  %v430 = vld [vmem:[%s1 + $0x5c0] sm:$0xf]
  %v431 = vld [vmem:[%s1 + $0x5c4] sm:$0xf]
  %v432 = vld [vmem:[%s1 + $0x5c8] sm:$0xf]
  %v433 = vld [vmem:[%s1 + $0x5cc] sm:$0xf]
  %v434 = vld [vmem:[%s1 + $0x5d0] sm:$0xf]
  %v435 = vld [vmem:[%s1 + $0x5d4] sm:$0xf]
  %v436 = vld [vmem:[%s1 + $0x5d8] sm:$0xf]
  %v437 = vld [vmem:[%s1 + $0x5dc] sm:$0xf]
  %v438 = vld [vmem:[%s1 + $0x5e0] sm:$0xf]
  %v439 = vld [vmem:[%s1 + $0x5e4] sm:$0xf]
  %v440 = vld [vmem:[%s1 + $0x5e8] sm:$0xf]
  %v441 = vld [vmem:[%s1 + $0x5ec] sm:$0xf]
  %v442 = vld [vmem:[%s1 + $0x5f0] sm:$0xf]
  %v443 = vld [vmem:[%s1 + $0x5f4] sm:$0xf]
  %v444 = vld [vmem:[%s1 + $0x5f8] sm:$0xf]
  %v445 = vld [vmem:[%s1 + $0x5fc] sm:$0xf]
  %v446 = vld [vmem:[%s2] sm:$0x1]
  %v448 = vperm.slane %v446, 0
  %v474 = vunpack.c.l.b16 %v38
  %v475 = vunpack.c.h.b16 %v38
  %v476 = vunpack.c.l.b16 %v39
  %v477 = vunpack.c.h.b16 %v39
  %v478 = vunpack.c.l.b16 %v40
  %v479 = vunpack.c.h.b16 %v40
  %v480 = vunpack.c.l.b16 %v41
  %v481 = vunpack.c.h.b16 %v41
  %v482 = vunpack.c.l.b16 %v42
  %v483 = vunpack.c.h.b16 %v42
  %v484 = vunpack.c.l.b16 %v43
  %v485 = vunpack.c.h.b16 %v43
  %v486 = vunpack.c.l.b16 %v44
  %v487 = vunpack.c.h.b16 %v44
  %v488 = vunpack.c.l.b16 %v45
  %v489 = vunpack.c.h.b16 %v45
  %v490 = vunpack.c.l.b16 %v46
  %v491 = vunpack.c.h.b16 %v46
  %v492 = vunpack.c.l.b16 %v47
  %v493 = vunpack.c.h.b16 %v47
  %v494 = vunpack.c.l.b16 %v48
  %v495 = vunpack.c.h.b16 %v48
  %v496 = vunpack.c.l.b16 %v49
  %v497 = vunpack.c.h.b16 %v49
  %v498 = vunpack.c.l.b16 %v50
  %v499 = vunpack.c.h.b16 %v50
  %v500 = vunpack.c.l.b16 %v51
  %v501 = vunpack.c.h.b16 %v51
  %v502 = vunpack.c.l.b16 %v52
  %v503 = vunpack.c.h.b16 %v52
  %v504 = vunpack.c.l.b16 %v53
  %v505 = vunpack.c.h.b16 %v53
  %v506 = vunpack.c.l.b16 %v54
  %v507 = vunpack.c.h.b16 %v54
  %v508 = vunpack.c.l.b16 %v55
  %v509 = vunpack.c.h.b16 %v55
  %v510 = vunpack.c.l.b16 %v56
  %v511 = vunpack.c.h.b16 %v56
  %v512 = vunpack.c.l.b16 %v57
  %v513 = vunpack.c.h.b16 %v57
  %v514 = vunpack.c.l.b16 %v58
  %v515 = vunpack.c.h.b16 %v58
  %v516 = vunpack.c.l.b16 %v59
  %v517 = vunpack.c.h.b16 %v59
  %v518 = vunpack.c.l.b16 %v60
  %v519 = vunpack.c.h.b16 %v60
  %v520 = vunpack.c.l.b16 %v61
  %v521 = vunpack.c.h.b16 %v61
  %v522 = vpack.c.b16 %v498, %v474
  %v523 = vpack.c.b16 %v499, %v475
  %v524 = vpack.c.b16 %v500, %v476
  %v525 = vpack.c.b16 %v501, %v477
  %v526 = vpack.c.b16 %v502, %v478
  %v527 = vpack.c.b16 %v503, %v479
  %v528 = vpack.c.b16 %v504, %v480
  %v529 = vpack.c.b16 %v505, %v481
  %v530 = vpack.c.b16 %v506, %v482
  %v531 = vpack.c.b16 %v507, %v483
  %v532 = vpack.c.b16 %v508, %v484
  %v533 = vpack.c.b16 %v509, %v485
  %v534 = vpack.c.b16 %v510, %v486
  %v535 = vpack.c.b16 %v511, %v487
  %v536 = vpack.c.b16 %v512, %v488
  %v537 = vpack.c.b16 %v513, %v489
  %v538 = vpack.c.b16 %v514, %v490
  %v539 = vpack.c.b16 %v515, %v491
  %v540 = vpack.c.b16 %v516, %v492
  %v541 = vpack.c.b16 %v517, %v493
  %v542 = vpack.c.b16 %v518, %v494
  %v543 = vpack.c.b16 %v519, %v495
  %v544 = vpack.c.b16 %v520, %v496
  %v545 = vpack.c.b16 %v521, %v497
  %v954 = vunpack.c.l.b16 %v62
  %v955 = vunpack.c.l.b16 %v63
  %v956 = vunpack.c.l.b16 %v64
  %v957 = vunpack.c.l.b16 %v65
  %v958 = vunpack.c.l.b16 %v66
  %v959 = vunpack.c.l.b16 %v67
  %v960 = vunpack.c.l.b16 %v68
  %v961 = vunpack.c.l.b16 %v69
  %v962 = vunpack.c.l.b16 %v70
  %v963 = vunpack.c.l.b16 %v71
  %v964 = vunpack.c.l.b16 %v72
  %v965 = vunpack.c.l.b16 %v73
  %v966 = vunpack.c.l.b16 %v74
  %v967 = vunpack.c.l.b16 %v75
  %v968 = vunpack.c.l.b16 %v76
  %v969 = vunpack.c.l.b16 %v77
  %v970 = vunpack.c.l.b16 %v78
  %v971 = vunpack.c.l.b16 %v79
  %v972 = vunpack.c.l.b16 %v80
  %v973 = vunpack.c.l.b16 %v81
  %v974 = vunpack.c.l.b16 %v82
  %v975 = vunpack.c.l.b16 %v83
  %v976 = vunpack.c.l.b16 %v84
  %v977 = vunpack.c.l.b16 %v85
  %v978 = vunpack.c.l.b16 %v86
  %v979 = vunpack.c.l.b16 %v87
  %v980 = vunpack.c.l.b16 %v88
  %v981 = vunpack.c.l.b16 %v89
  %v982 = vunpack.c.l.b16 %v90
  %v983 = vunpack.c.l.b16 %v91
  %v984 = vunpack.c.l.b16 %v92
  %v985 = vunpack.c.l.b16 %v93
  %v986 = vunpack.c.l.b16 %v94
  %v987 = vunpack.c.l.b16 %v95
  %v988 = vunpack.c.l.b16 %v96
  %v989 = vunpack.c.l.b16 %v97
  %v990 = vunpack.c.l.b16 %v98
  %v991 = vunpack.c.l.b16 %v99
  %v992 = vunpack.c.l.b16 %v100
  %v993 = vunpack.c.l.b16 %v101
  %v994 = vunpack.c.l.b16 %v102
  %v995 = vunpack.c.l.b16 %v103
  %v996 = vunpack.c.l.b16 %v104
  %v997 = vunpack.c.l.b16 %v105
  %v998 = vunpack.c.l.b16 %v106
  %v999 = vunpack.c.l.b16 %v107
  %v1000 = vunpack.c.l.b16 %v108
  %v1001 = vunpack.c.l.b16 %v109
  %v1002 = vunpack.c.l.b16 %v110
  %v1003 = vunpack.c.l.b16 %v111
  %v1004 = vunpack.c.l.b16 %v112
  %v1005 = vunpack.c.l.b16 %v113
  %v1006 = vunpack.c.l.b16 %v114
  %v1007 = vunpack.c.l.b16 %v115
  %v1008 = vunpack.c.l.b16 %v116
  %v1009 = vunpack.c.l.b16 %v117
  %v1010 = vunpack.c.l.b16 %v118
  %v1011 = vunpack.c.l.b16 %v119
  %v1012 = vunpack.c.l.b16 %v120
  %v1013 = vunpack.c.l.b16 %v121
  %v1014 = vunpack.c.l.b16 %v122
  %v1015 = vunpack.c.l.b16 %v123
  %v1016 = vunpack.c.l.b16 %v124
  %v1017 = vunpack.c.l.b16 %v125
  %v1018 = vunpack.c.l.b16 %v126
  %v1019 = vunpack.c.l.b16 %v127
  %v1020 = vunpack.c.l.b16 %v128
  %v1021 = vunpack.c.l.b16 %v129
  %v1022 = vunpack.c.l.b16 %v130
  %v1023 = vunpack.c.l.b16 %v131
  %v1024 = vunpack.c.l.b16 %v132
  %v1025 = vunpack.c.l.b16 %v133
  %v1026 = vunpack.c.l.b16 %v134
  %v1027 = vunpack.c.l.b16 %v135
  %v1028 = vunpack.c.l.b16 %v136
  %v1029 = vunpack.c.l.b16 %v137
  %v1030 = vunpack.c.l.b16 %v138
  %v1031 = vunpack.c.l.b16 %v139
  %v1032 = vunpack.c.l.b16 %v140
  %v1033 = vunpack.c.l.b16 %v141
  %v1034 = vunpack.c.l.b16 %v142
  %v1035 = vunpack.c.l.b16 %v143
  %v1036 = vunpack.c.l.b16 %v144
  %v1037 = vunpack.c.l.b16 %v145
  %v1038 = vunpack.c.l.b16 %v146
  %v1039 = vunpack.c.l.b16 %v147
  %v1040 = vunpack.c.l.b16 %v148
  %v1041 = vunpack.c.l.b16 %v149
  %v1042 = vunpack.c.l.b16 %v150
  %v1043 = vunpack.c.l.b16 %v151
  %v1044 = vunpack.c.l.b16 %v152
  %v1045 = vunpack.c.l.b16 %v153
  %v1046 = vunpack.c.l.b16 %v154
  %v1047 = vunpack.c.l.b16 %v155
  %v1048 = vunpack.c.l.b16 %v156
  %v1049 = vunpack.c.l.b16 %v157
  %v1050 = vunpack.c.l.b16 %v158
  %v1051 = vunpack.c.l.b16 %v159
  %v1052 = vunpack.c.l.b16 %v160
  %v1053 = vunpack.c.l.b16 %v161
  %v1054 = vunpack.c.l.b16 %v162
  %v1055 = vunpack.c.l.b16 %v163
  %v1056 = vunpack.c.l.b16 %v164
  %v1057 = vunpack.c.l.b16 %v165
  %v1058 = vunpack.c.l.b16 %v166
  %v1059 = vunpack.c.l.b16 %v167
  %v1060 = vunpack.c.l.b16 %v168
  %v1061 = vunpack.c.l.b16 %v169
  %v1062 = vunpack.c.l.b16 %v170
  %v1063 = vunpack.c.l.b16 %v171
  %v1064 = vunpack.c.l.b16 %v172
  %v1065 = vunpack.c.l.b16 %v173
  %v1066 = vunpack.c.l.b16 %v174
  %v1067 = vunpack.c.l.b16 %v175
  %v1068 = vunpack.c.l.b16 %v176
  %v1069 = vunpack.c.l.b16 %v177
  %v1070 = vunpack.c.l.b16 %v178
  %v1071 = vunpack.c.l.b16 %v179
  %v1072 = vunpack.c.l.b16 %v180
  %v1073 = vunpack.c.l.b16 %v181
  %v1074 = vunpack.c.l.b16 %v182
  %v1075 = vunpack.c.l.b16 %v183
  %v1076 = vunpack.c.l.b16 %v184
  %v1077 = vunpack.c.l.b16 %v185
  %v1078 = vunpack.c.l.b16 %v186
  %v1079 = vunpack.c.l.b16 %v187
  %v1080 = vunpack.c.l.b16 %v188
  %v1081 = vunpack.c.l.b16 %v189
  %v1082 = vunpack.c.l.b16 %v190
  %v1083 = vunpack.c.l.b16 %v191
  %v1084 = vunpack.c.l.b16 %v192
  %v1085 = vunpack.c.l.b16 %v193
  %v1086 = vunpack.c.l.b16 %v194
  %v1087 = vunpack.c.l.b16 %v195
  %v1088 = vunpack.c.l.b16 %v196
  %v1089 = vunpack.c.l.b16 %v197
  %v1090 = vunpack.c.l.b16 %v198
  %v1091 = vunpack.c.l.b16 %v199
  %v1092 = vunpack.c.l.b16 %v200
  %v1093 = vunpack.c.l.b16 %v201
  %v1094 = vunpack.c.l.b16 %v202
  %v1095 = vunpack.c.l.b16 %v203
  %v1096 = vunpack.c.l.b16 %v204
  %v1097 = vunpack.c.l.b16 %v205
  %v1098 = vunpack.c.l.b16 %v206
  %v1099 = vunpack.c.l.b16 %v207
  %v1100 = vunpack.c.l.b16 %v208
  %v1101 = vunpack.c.l.b16 %v209
  %v1102 = vunpack.c.l.b16 %v210
  %v1103 = vunpack.c.l.b16 %v211
  %v1104 = vunpack.c.l.b16 %v212
  %v1105 = vunpack.c.l.b16 %v213
  %v1106 = vunpack.c.l.b16 %v214
  %v1107 = vunpack.c.l.b16 %v215
  %v1108 = vunpack.c.l.b16 %v216
  %v1109 = vunpack.c.l.b16 %v217
  %v1110 = vunpack.c.l.b16 %v218
  %v1111 = vunpack.c.l.b16 %v219
  %v1112 = vunpack.c.l.b16 %v220
  %v1113 = vunpack.c.l.b16 %v221
  %v1114 = vunpack.c.l.b16 %v222
  %v1115 = vunpack.c.l.b16 %v223
  %v1116 = vunpack.c.l.b16 %v224
  %v1117 = vunpack.c.l.b16 %v225
  %v1118 = vunpack.c.l.b16 %v226
  %v1119 = vunpack.c.l.b16 %v227
  %v1120 = vunpack.c.l.b16 %v228
  %v1121 = vunpack.c.l.b16 %v229
  %v1122 = vunpack.c.l.b16 %v230
  %v1123 = vunpack.c.l.b16 %v231
  %v1124 = vunpack.c.l.b16 %v232
  %v1125 = vunpack.c.l.b16 %v233
  %v1126 = vunpack.c.l.b16 %v234
  %v1127 = vunpack.c.l.b16 %v235
  %v1128 = vunpack.c.l.b16 %v236
  %v1129 = vunpack.c.l.b16 %v237
  %v1130 = vunpack.c.l.b16 %v238
  %v1131 = vunpack.c.l.b16 %v239
  %v1132 = vunpack.c.l.b16 %v240
  %v1133 = vunpack.c.l.b16 %v241
  %v1134 = vunpack.c.l.b16 %v242
  %v1135 = vunpack.c.l.b16 %v243
  %v1136 = vunpack.c.l.b16 %v244
  %v1137 = vunpack.c.l.b16 %v245
  %v1138 = vunpack.c.l.b16 %v246
  %v1139 = vunpack.c.l.b16 %v247
  %v1140 = vunpack.c.l.b16 %v248
  %v1141 = vunpack.c.l.b16 %v249
  %v1142 = vunpack.c.l.b16 %v250
  %v1143 = vunpack.c.l.b16 %v251
  %v1144 = vunpack.c.l.b16 %v252
  %v1145 = vunpack.c.l.b16 %v253
  %v1146 = vunpack.c.l.b16 %v254
  %v1147 = vunpack.c.l.b16 %v255
  %v1148 = vunpack.c.l.b16 %v256
  %v1149 = vunpack.c.l.b16 %v257
  %v1150 = vunpack.c.l.b16 %v258
  %v1151 = vunpack.c.l.b16 %v259
  %v1152 = vunpack.c.l.b16 %v260
  %v1153 = vunpack.c.l.b16 %v261
  %v1154 = vunpack.c.l.b16 %v262
  %v1155 = vunpack.c.l.b16 %v263
  %v1156 = vunpack.c.l.b16 %v264
  %v1157 = vunpack.c.l.b16 %v265
  %v1158 = vunpack.c.l.b16 %v266
  %v1159 = vunpack.c.l.b16 %v267
  %v1160 = vunpack.c.l.b16 %v268
  %v1161 = vunpack.c.l.b16 %v269
  %v1162 = vunpack.c.l.b16 %v270
  %v1163 = vunpack.c.l.b16 %v271
  %v1164 = vunpack.c.l.b16 %v272
  %v1165 = vunpack.c.l.b16 %v273
  %v1166 = vunpack.c.l.b16 %v274
  %v1167 = vunpack.c.l.b16 %v275
  %v1168 = vunpack.c.l.b16 %v276
  %v1169 = vunpack.c.l.b16 %v277
  %v1170 = vunpack.c.l.b16 %v278
  %v1171 = vunpack.c.l.b16 %v279
  %v1172 = vunpack.c.l.b16 %v280
  %v1173 = vunpack.c.l.b16 %v281
  %v1174 = vunpack.c.l.b16 %v282
  %v1175 = vunpack.c.l.b16 %v283
  %v1176 = vunpack.c.l.b16 %v284
  %v1177 = vunpack.c.l.b16 %v285
  %v1178 = vunpack.c.l.b16 %v286
  %v1179 = vunpack.c.l.b16 %v287
  %v1180 = vunpack.c.l.b16 %v288
  %v1181 = vunpack.c.l.b16 %v289
  %v1182 = vunpack.c.l.b16 %v290
  %v1183 = vunpack.c.l.b16 %v291
  %v1184 = vunpack.c.l.b16 %v292
  %v1185 = vunpack.c.l.b16 %v293
  %v1186 = vunpack.c.l.b16 %v294
  %v1187 = vunpack.c.l.b16 %v295
  %v1188 = vunpack.c.l.b16 %v296
  %v1189 = vunpack.c.l.b16 %v297
  %v1190 = vunpack.c.l.b16 %v298
  %v1191 = vunpack.c.l.b16 %v299
  %v1192 = vunpack.c.l.b16 %v300
  %v1193 = vunpack.c.l.b16 %v301
  %v1194 = vunpack.c.l.b16 %v302
  %v1195 = vunpack.c.l.b16 %v303
  %v1196 = vunpack.c.l.b16 %v304
  %v1197 = vunpack.c.l.b16 %v305
  %v1198 = vunpack.c.l.b16 %v306
  %v1199 = vunpack.c.l.b16 %v307
  %v1200 = vunpack.c.l.b16 %v308
  %v1201 = vunpack.c.l.b16 %v309
  %v1202 = vunpack.c.l.b16 %v310
  %v1203 = vunpack.c.l.b16 %v311
  %v1204 = vunpack.c.l.b16 %v312
  %v1205 = vunpack.c.l.b16 %v313
  %v1206 = vunpack.c.l.b16 %v314
  %v1207 = vunpack.c.l.b16 %v315
  %v1208 = vunpack.c.l.b16 %v316
  %v1209 = vunpack.c.l.b16 %v317
  %v1210 = vunpack.c.l.b16 %v318
  %v1211 = vunpack.c.l.b16 %v319
  %v1212 = vunpack.c.l.b16 %v320
  %v1213 = vunpack.c.l.b16 %v321
  %v1214 = vunpack.c.l.b16 %v322
  %v1215 = vunpack.c.l.b16 %v323
  %v1216 = vunpack.c.l.b16 %v324
  %v1217 = vunpack.c.l.b16 %v325
  %v1218 = vunpack.c.l.b16 %v326
  %v1219 = vunpack.c.l.b16 %v327
  %v1220 = vunpack.c.l.b16 %v328
  %v1221 = vunpack.c.l.b16 %v329
  %v1222 = vunpack.c.l.b16 %v330
  %v1223 = vunpack.c.l.b16 %v331
  %v1224 = vunpack.c.l.b16 %v332
  %v1225 = vunpack.c.l.b16 %v333
  %v1226 = vunpack.c.l.b16 %v334
  %v1227 = vunpack.c.l.b16 %v335
  %v1228 = vunpack.c.l.b16 %v336
  %v1229 = vunpack.c.l.b16 %v337
  %v1230 = vunpack.c.l.b16 %v338
  %v1231 = vunpack.c.l.b16 %v339
  %v1232 = vunpack.c.l.b16 %v340
  %v1233 = vunpack.c.l.b16 %v341
  %v1234 = vunpack.c.l.b16 %v342
  %v1235 = vunpack.c.l.b16 %v343
  %v1236 = vunpack.c.l.b16 %v344
  %v1237 = vunpack.c.l.b16 %v345
  %v1238 = vunpack.c.l.b16 %v346
  %v1239 = vunpack.c.l.b16 %v347
  %v1240 = vunpack.c.l.b16 %v348
  %v1241 = vunpack.c.l.b16 %v349
  %v1242 = vunpack.c.l.b16 %v350
  %v1243 = vunpack.c.l.b16 %v351
  %v1244 = vunpack.c.l.b16 %v352
  %v1245 = vunpack.c.l.b16 %v353
  %v1246 = vunpack.c.l.b16 %v354
  %v1247 = vunpack.c.l.b16 %v355
  %v1248 = vunpack.c.l.b16 %v356
  %v1249 = vunpack.c.l.b16 %v357
  %v1250 = vunpack.c.l.b16 %v358
  %v1251 = vunpack.c.l.b16 %v359
  %v1252 = vunpack.c.l.b16 %v360
  %v1253 = vunpack.c.l.b16 %v361
  %v1254 = vunpack.c.l.b16 %v362
  %v1255 = vunpack.c.l.b16 %v363
  %v1256 = vunpack.c.l.b16 %v364
  %v1257 = vunpack.c.l.b16 %v365
  %v1258 = vunpack.c.l.b16 %v366
  %v1259 = vunpack.c.l.b16 %v367
  %v1260 = vunpack.c.l.b16 %v368
  %v1261 = vunpack.c.l.b16 %v369
  %v1262 = vunpack.c.l.b16 %v370
  %v1263 = vunpack.c.l.b16 %v371
  %v1264 = vunpack.c.l.b16 %v372
  %v1265 = vunpack.c.l.b16 %v373
  %v1266 = vunpack.c.l.b16 %v374
  %v1267 = vunpack.c.l.b16 %v375
  %v1268 = vunpack.c.l.b16 %v376
  %v1269 = vunpack.c.l.b16 %v377
  %v1270 = vunpack.c.l.b16 %v378
  %v1271 = vunpack.c.l.b16 %v379
  %v1272 = vunpack.c.l.b16 %v380
  %v1273 = vunpack.c.l.b16 %v381
  %v1274 = vunpack.c.l.b16 %v382
  %v1275 = vunpack.c.l.b16 %v383
  %v1276 = vunpack.c.l.b16 %v384
  %v1277 = vunpack.c.l.b16 %v385
  %v1278 = vunpack.c.l.b16 %v386
  %v1279 = vunpack.c.l.b16 %v387
  %v1280 = vunpack.c.l.b16 %v388
  %v1281 = vunpack.c.l.b16 %v389
  %v1282 = vunpack.c.l.b16 %v390
  %v1283 = vunpack.c.l.b16 %v391
  %v1284 = vunpack.c.l.b16 %v392
  %v1285 = vunpack.c.l.b16 %v393
  %v1286 = vunpack.c.l.b16 %v394
  %v1287 = vunpack.c.l.b16 %v395
  %v1288 = vunpack.c.l.b16 %v396
  %v1289 = vunpack.c.l.b16 %v397
  %v1290 = vunpack.c.l.b16 %v398
  %v1291 = vunpack.c.l.b16 %v399
  %v1292 = vunpack.c.l.b16 %v400
  %v1293 = vunpack.c.l.b16 %v401
  %v1294 = vunpack.c.l.b16 %v402
  %v1295 = vunpack.c.l.b16 %v403
  %v1296 = vunpack.c.l.b16 %v404
  %v1297 = vunpack.c.l.b16 %v405
  %v1298 = vunpack.c.l.b16 %v406
  %v1299 = vunpack.c.l.b16 %v407
  %v1300 = vunpack.c.l.b16 %v408
  %v1301 = vunpack.c.l.b16 %v409
  %v1302 = vunpack.c.l.b16 %v410
  %v1303 = vunpack.c.l.b16 %v411
  %v1304 = vunpack.c.l.b16 %v412
  %v1305 = vunpack.c.l.b16 %v413
  %v1306 = vunpack.c.l.b16 %v414
  %v1307 = vunpack.c.l.b16 %v415
  %v1308 = vunpack.c.l.b16 %v416
  %v1309 = vunpack.c.l.b16 %v417
  %v1310 = vunpack.c.l.b16 %v418
  %v1311 = vunpack.c.l.b16 %v419
  %v1312 = vunpack.c.l.b16 %v420
  %v1313 = vunpack.c.l.b16 %v421
  %v1314 = vunpack.c.l.b16 %v422
  %v1315 = vunpack.c.l.b16 %v423
  %v1316 = vunpack.c.l.b16 %v424
  %v1317 = vunpack.c.l.b16 %v425
  %v1318 = vunpack.c.l.b16 %v426
  %v1319 = vunpack.c.l.b16 %v427
  %v1320 = vunpack.c.l.b16 %v428
  %v1321 = vunpack.c.l.b16 %v429
  %v1322 = vunpack.c.l.b16 %v430
  %v1323 = vunpack.c.l.b16 %v431
  %v1324 = vunpack.c.l.b16 %v432
  %v1325 = vunpack.c.l.b16 %v433
  %v1326 = vunpack.c.l.b16 %v434
  %v1327 = vunpack.c.l.b16 %v435
  %v1328 = vunpack.c.l.b16 %v436
  %v1329 = vunpack.c.l.b16 %v437
  %v1330 = vunpack.c.l.b16 %v438
  %v1331 = vunpack.c.l.b16 %v439
  %v1332 = vunpack.c.l.b16 %v440
  %v1333 = vunpack.c.l.b16 %v441
  %v1334 = vunpack.c.l.b16 %v442
  %v1335 = vunpack.c.l.b16 %v443
  %v1336 = vunpack.c.l.b16 %v444
  %v1337 = vunpack.c.l.b16 %v445
  %v1338 = vpack.c.b16 %v955, %v954
  %v1339 = vpack.c.b16 %v957, %v956
  %v1340 = vpack.c.b16 %v959, %v958
  %v1341 = vpack.c.b16 %v961, %v960
  %v1342 = vpack.c.b16 %v963, %v962
  %v1343 = vpack.c.b16 %v965, %v964
  %v1344 = vpack.c.b16 %v967, %v966
  %v1345 = vpack.c.b16 %v969, %v968
  %v1346 = vpack.c.b16 %v971, %v970
  %v1347 = vpack.c.b16 %v973, %v972
  %v1348 = vpack.c.b16 %v975, %v974
  %v1349 = vpack.c.b16 %v977, %v976
  %v1350 = vpack.c.b16 %v979, %v978
  %v1351 = vpack.c.b16 %v981, %v980
  %v1352 = vpack.c.b16 %v983, %v982
  %v1353 = vpack.c.b16 %v985, %v984
  %v1354 = vpack.c.b16 %v987, %v986
  %v1355 = vpack.c.b16 %v989, %v988
  %v1356 = vpack.c.b16 %v991, %v990
  %v1357 = vpack.c.b16 %v993, %v992
  %v1358 = vpack.c.b16 %v995, %v994
  %v1359 = vpack.c.b16 %v997, %v996
  %v1360 = vpack.c.b16 %v999, %v998
  %v1361 = vpack.c.b16 %v1001, %v1000
  %v1362 = vpack.c.b16 %v1003, %v1002
  %v1363 = vpack.c.b16 %v1005, %v1004
  %v1364 = vpack.c.b16 %v1007, %v1006
  %v1365 = vpack.c.b16 %v1009, %v1008
  %v1366 = vpack.c.b16 %v1011, %v1010
  %v1367 = vpack.c.b16 %v1013, %v1012
  %v1368 = vpack.c.b16 %v1015, %v1014
  %v1369 = vpack.c.b16 %v1017, %v1016
  %v1370 = vpack.c.b16 %v1019, %v1018
  %v1371 = vpack.c.b16 %v1021, %v1020
  %v1372 = vpack.c.b16 %v1023, %v1022
  %v1373 = vpack.c.b16 %v1025, %v1024
  %v1374 = vpack.c.b16 %v1027, %v1026
  %v1375 = vpack.c.b16 %v1029, %v1028
  %v1376 = vpack.c.b16 %v1031, %v1030
  %v1377 = vpack.c.b16 %v1033, %v1032
  %v1378 = vpack.c.b16 %v1035, %v1034
  %v1379 = vpack.c.b16 %v1037, %v1036
  %v1380 = vpack.c.b16 %v1039, %v1038
  %v1381 = vpack.c.b16 %v1041, %v1040
  %v1382 = vpack.c.b16 %v1043, %v1042
  %v1383 = vpack.c.b16 %v1045, %v1044
  %v1384 = vpack.c.b16 %v1047, %v1046
  %v1385 = vpack.c.b16 %v1049, %v1048
  %v1386 = vpack.c.b16 %v1051, %v1050
  %v1387 = vpack.c.b16 %v1053, %v1052
  %v1388 = vpack.c.b16 %v1055, %v1054
  %v1389 = vpack.c.b16 %v1057, %v1056
  %v1390 = vpack.c.b16 %v1059, %v1058
  %v1391 = vpack.c.b16 %v1061, %v1060
  %v1392 = vpack.c.b16 %v1063, %v1062
  %v1393 = vpack.c.b16 %v1065, %v1064
  %v1394 = vpack.c.b16 %v1067, %v1066
  %v1395 = vpack.c.b16 %v1069, %v1068
  %v1396 = vpack.c.b16 %v1071, %v1070
  %v1397 = vpack.c.b16 %v1073, %v1072
  %v1398 = vpack.c.b16 %v1075, %v1074
  %v1399 = vpack.c.b16 %v1077, %v1076
  %v1400 = vpack.c.b16 %v1079, %v1078
  %v1401 = vpack.c.b16 %v1081, %v1080
  %v1402 = vpack.c.b16 %v1083, %v1082
  %v1403 = vpack.c.b16 %v1085, %v1084
  %v1404 = vpack.c.b16 %v1087, %v1086
  %v1405 = vpack.c.b16 %v1089, %v1088
  %v1406 = vpack.c.b16 %v1091, %v1090
  %v1407 = vpack.c.b16 %v1093, %v1092
  %v1408 = vpack.c.b16 %v1095, %v1094
  %v1409 = vpack.c.b16 %v1097, %v1096
  %v1410 = vpack.c.b16 %v1099, %v1098
  %v1411 = vpack.c.b16 %v1101, %v1100
  %v1412 = vpack.c.b16 %v1103, %v1102
  %v1413 = vpack.c.b16 %v1105, %v1104
  %v1414 = vpack.c.b16 %v1107, %v1106
  %v1415 = vpack.c.b16 %v1109, %v1108
  %v1416 = vpack.c.b16 %v1111, %v1110
  %v1417 = vpack.c.b16 %v1113, %v1112
  %v1418 = vpack.c.b16 %v1115, %v1114
  %v1419 = vpack.c.b16 %v1117, %v1116
  %v1420 = vpack.c.b16 %v1119, %v1118
  %v1421 = vpack.c.b16 %v1121, %v1120
  %v1422 = vpack.c.b16 %v1123, %v1122
  %v1423 = vpack.c.b16 %v1125, %v1124
  %v1424 = vpack.c.b16 %v1127, %v1126
  %v1425 = vpack.c.b16 %v1129, %v1128
  %v1426 = vpack.c.b16 %v1131, %v1130
  %v1427 = vpack.c.b16 %v1133, %v1132
  %v1428 = vpack.c.b16 %v1135, %v1134
  %v1429 = vpack.c.b16 %v1137, %v1136
  %v1430 = vpack.c.b16 %v1139, %v1138
  %v1431 = vpack.c.b16 %v1141, %v1140
  %v1432 = vpack.c.b16 %v1143, %v1142
  %v1433 = vpack.c.b16 %v1145, %v1144
  %v1434 = vpack.c.b16 %v1147, %v1146
  %v1435 = vpack.c.b16 %v1149, %v1148
  %v1436 = vpack.c.b16 %v1151, %v1150
  %v1437 = vpack.c.b16 %v1153, %v1152
  %v1438 = vpack.c.b16 %v1155, %v1154
  %v1439 = vpack.c.b16 %v1157, %v1156
  %v1440 = vpack.c.b16 %v1159, %v1158
  %v1441 = vpack.c.b16 %v1161, %v1160
  %v1442 = vpack.c.b16 %v1163, %v1162
  %v1443 = vpack.c.b16 %v1165, %v1164
  %v1444 = vpack.c.b16 %v1167, %v1166
  %v1445 = vpack.c.b16 %v1169, %v1168
  %v1446 = vpack.c.b16 %v1171, %v1170
  %v1447 = vpack.c.b16 %v1173, %v1172
  %v1448 = vpack.c.b16 %v1175, %v1174
  %v1449 = vpack.c.b16 %v1177, %v1176
  %v1450 = vpack.c.b16 %v1179, %v1178
  %v1451 = vpack.c.b16 %v1181, %v1180
  %v1452 = vpack.c.b16 %v1183, %v1182
  %v1453 = vpack.c.b16 %v1185, %v1184
  %v1454 = vpack.c.b16 %v1187, %v1186
  %v1455 = vpack.c.b16 %v1189, %v1188
  %v1456 = vpack.c.b16 %v1191, %v1190
  %v1457 = vpack.c.b16 %v1193, %v1192
  %v1458 = vpack.c.b16 %v1195, %v1194
  %v1459 = vpack.c.b16 %v1197, %v1196
  %v1460 = vpack.c.b16 %v1199, %v1198
  %v1461 = vpack.c.b16 %v1201, %v1200
  %v1462 = vpack.c.b16 %v1203, %v1202
  %v1463 = vpack.c.b16 %v1205, %v1204
  %v1464 = vpack.c.b16 %v1207, %v1206
  %v1465 = vpack.c.b16 %v1209, %v1208
  %v1466 = vpack.c.b16 %v1211, %v1210
  %v1467 = vpack.c.b16 %v1213, %v1212
  %v1468 = vpack.c.b16 %v1215, %v1214
  %v1469 = vpack.c.b16 %v1217, %v1216
  %v1470 = vpack.c.b16 %v1219, %v1218
  %v1471 = vpack.c.b16 %v1221, %v1220
  %v1472 = vpack.c.b16 %v1223, %v1222
  %v1473 = vpack.c.b16 %v1225, %v1224
  %v1474 = vpack.c.b16 %v1227, %v1226
  %v1475 = vpack.c.b16 %v1229, %v1228
  %v1476 = vpack.c.b16 %v1231, %v1230
  %v1477 = vpack.c.b16 %v1233, %v1232
  %v1478 = vpack.c.b16 %v1235, %v1234
  %v1479 = vpack.c.b16 %v1237, %v1236
  %v1480 = vpack.c.b16 %v1239, %v1238
  %v1481 = vpack.c.b16 %v1241, %v1240
  %v1482 = vpack.c.b16 %v1243, %v1242
  %v1483 = vpack.c.b16 %v1245, %v1244
  %v1484 = vpack.c.b16 %v1247, %v1246
  %v1485 = vpack.c.b16 %v1249, %v1248
  %v1486 = vpack.c.b16 %v1251, %v1250
  %v1487 = vpack.c.b16 %v1253, %v1252
  %v1488 = vpack.c.b16 %v1255, %v1254
  %v1489 = vpack.c.b16 %v1257, %v1256
  %v1490 = vpack.c.b16 %v1259, %v1258
  %v1491 = vpack.c.b16 %v1261, %v1260
  %v1492 = vpack.c.b16 %v1263, %v1262
  %v1493 = vpack.c.b16 %v1265, %v1264
  %v1494 = vpack.c.b16 %v1267, %v1266
  %v1495 = vpack.c.b16 %v1269, %v1268
  %v1496 = vpack.c.b16 %v1271, %v1270
  %v1497 = vpack.c.b16 %v1273, %v1272
  %v1498 = vpack.c.b16 %v1275, %v1274
  %v1499 = vpack.c.b16 %v1277, %v1276
  %v1500 = vpack.c.b16 %v1279, %v1278
  %v1501 = vpack.c.b16 %v1281, %v1280
  %v1502 = vpack.c.b16 %v1283, %v1282
  %v1503 = vpack.c.b16 %v1285, %v1284
  %v1504 = vpack.c.b16 %v1287, %v1286
  %v1505 = vpack.c.b16 %v1289, %v1288
  %v1506 = vpack.c.b16 %v1291, %v1290
  %v1507 = vpack.c.b16 %v1293, %v1292
  %v1508 = vpack.c.b16 %v1295, %v1294
  %v1509 = vpack.c.b16 %v1297, %v1296
  %v1510 = vpack.c.b16 %v1299, %v1298
  %v1511 = vpack.c.b16 %v1301, %v1300
  %v1512 = vpack.c.b16 %v1303, %v1302
  %v1513 = vpack.c.b16 %v1305, %v1304
  %v1514 = vpack.c.b16 %v1307, %v1306
  %v1515 = vpack.c.b16 %v1309, %v1308
  %v1516 = vpack.c.b16 %v1311, %v1310
  %v1517 = vpack.c.b16 %v1313, %v1312
  %v1518 = vpack.c.b16 %v1315, %v1314
  %v1519 = vpack.c.b16 %v1317, %v1316
  %v1520 = vpack.c.b16 %v1319, %v1318
  %v1521 = vpack.c.b16 %v1321, %v1320
  %v1522 = vpack.c.b16 %v1323, %v1322
  %v1523 = vpack.c.b16 %v1325, %v1324
  %v1524 = vpack.c.b16 %v1327, %v1326
  %v1525 = vpack.c.b16 %v1329, %v1328
  %v1526 = vpack.c.b16 %v1331, %v1330
  %v1527 = vpack.c.b16 %v1333, %v1332
  %v1528 = vpack.c.b16 %v1335, %v1334
  %v1529 = vpack.c.b16 %v1337, %v1336
  %1722 = vmatpush.bf16.msra.mxu0 %v1345
  %1723 = vmatpush.bf16.msra.mxu0 %v1344
  %1724 = vmatpush.bf16.msra.mxu0 %v1343
  %1725 = vmatpush.bf16.msra.mxu0 %v1342
  %1726 = vmatpush.bf16.msra.mxu0 %v1341
  %1727 = vmatpush.bf16.msra.mxu0 %v1340
  %1728 = vmatpush.bf16.msra.mxu0 %v1339
  %1729 = vmatpush.bf16.msra.mxu0 %v1338
  %1730 = vmatmul.bf16.gmra.mxu0 %v522
  %v1731 = vpop.f32.mrf.mxu0
  %v1732 = vadd.f32 %v448, %v1731
  %v1733 = vpop.f32.mrf.mxu0
  %v1734 = vadd.f32 %v448, %v1733
  %1735 = vdwg.mxu0
  %1736 = vmatpush.bf16.msra.mxu0 %v1353
  %1737 = vmatpush.bf16.msra.mxu0 %v1352
  %1738 = vmatpush.bf16.msra.mxu0 %v1351
  %1739 = vmatpush.bf16.msra.mxu0 %v1350
  %1740 = vmatpush.bf16.msra.mxu0 %v1349
  %1741 = vmatpush.bf16.msra.mxu0 %v1348
  %1742 = vmatpush.bf16.msra.mxu0 %v1347
  %1743 = vmatpush.bf16.msra.mxu0 %v1346
  %1744 = vmatmul.bf16.gmra.mxu0 %v523
  %v1745 = vpop.f32.mrf.mxu0
  %v1746 = vadd.f32 %v1732, %v1745
  %v1747 = vpop.f32.mrf.mxu0
  %v1748 = vadd.f32 %v1734, %v1747
  %1749 = vdwg.mxu0
  %1750 = vmatpush.bf16.msra.mxu0 %v1361
  %1751 = vmatpush.bf16.msra.mxu0 %v1360
  %1752 = vmatpush.bf16.msra.mxu0 %v1359
  %1753 = vmatpush.bf16.msra.mxu0 %v1358
  %1754 = vmatpush.bf16.msra.mxu0 %v1357
  %1755 = vmatpush.bf16.msra.mxu0 %v1356
  %1756 = vmatpush.bf16.msra.mxu0 %v1355
  %1757 = vmatpush.bf16.msra.mxu0 %v1354
  %1758 = vmatmul.bf16.gmra.mxu0 %v524
  %v1759 = vpop.f32.mrf.mxu0
  %v1760 = vadd.f32 %v1746, %v1759
  %v1761 = vpop.f32.mrf.mxu0
  %v1762 = vadd.f32 %v1748, %v1761
  %1763 = vdwg.mxu0
  %1764 = vmatpush.bf16.msra.mxu0 %v1369
  %1765 = vmatpush.bf16.msra.mxu0 %v1368
  %1766 = vmatpush.bf16.msra.mxu0 %v1367
  %1767 = vmatpush.bf16.msra.mxu0 %v1366
  %1768 = vmatpush.bf16.msra.mxu0 %v1365
  %1769 = vmatpush.bf16.msra.mxu0 %v1364
  %1770 = vmatpush.bf16.msra.mxu0 %v1363
  %1771 = vmatpush.bf16.msra.mxu0 %v1362
  %1772 = vmatmul.bf16.gmra.mxu0 %v525
  %v1773 = vpop.f32.mrf.mxu0
  %v1774 = vadd.f32 %v1760, %v1773
  %v1775 = vpop.f32.mrf.mxu0
  %v1776 = vadd.f32 %v1762, %v1775
  %1777 = vdwg.mxu0
  %1778 = vmatpush.bf16.msra.mxu0 %v1377
  %1779 = vmatpush.bf16.msra.mxu0 %v1376
  %1780 = vmatpush.bf16.msra.mxu0 %v1375
  %1781 = vmatpush.bf16.msra.mxu0 %v1374
  %1782 = vmatpush.bf16.msra.mxu0 %v1373
  %1783 = vmatpush.bf16.msra.mxu0 %v1372
  %1784 = vmatpush.bf16.msra.mxu0 %v1371
  %1785 = vmatpush.bf16.msra.mxu0 %v1370
  %1786 = vmatmul.bf16.gmra.mxu0 %v526
  %v1787 = vpop.f32.mrf.mxu0
  %v1788 = vadd.f32 %v1774, %v1787
  %v1789 = vpop.f32.mrf.mxu0
  %v1790 = vadd.f32 %v1776, %v1789
  %1791 = vdwg.mxu0
  %1792 = vmatpush.bf16.msra.mxu0 %v1385
  %1793 = vmatpush.bf16.msra.mxu0 %v1384
  %1794 = vmatpush.bf16.msra.mxu0 %v1383
  %1795 = vmatpush.bf16.msra.mxu0 %v1382
  %1796 = vmatpush.bf16.msra.mxu0 %v1381
  %1797 = vmatpush.bf16.msra.mxu0 %v1380
  %1798 = vmatpush.bf16.msra.mxu0 %v1379
  %1799 = vmatpush.bf16.msra.mxu0 %v1378
  %1800 = vmatmul.bf16.gmra.mxu0 %v527
  %v1801 = vpop.f32.mrf.mxu0
  %v1802 = vadd.f32 %v1788, %v1801
  %v1803 = vpop.f32.mrf.mxu0
  %v1804 = vadd.f32 %v1790, %v1803
  %1805 = vdwg.mxu0
  %1806 = vmatpush.bf16.msra.mxu0 %v1393
  %1807 = vmatpush.bf16.msra.mxu0 %v1392
  %1808 = vmatpush.bf16.msra.mxu0 %v1391
  %1809 = vmatpush.bf16.msra.mxu0 %v1390
  %1810 = vmatpush.bf16.msra.mxu0 %v1389
  %1811 = vmatpush.bf16.msra.mxu0 %v1388
  %1812 = vmatpush.bf16.msra.mxu0 %v1387
  %1813 = vmatpush.bf16.msra.mxu0 %v1386
  %1814 = vmatmul.bf16.gmra.mxu0 %v528
  %v1815 = vpop.f32.mrf.mxu0
  %v1816 = vadd.f32 %v1802, %v1815
  %v1817 = vpop.f32.mrf.mxu0
  %v1818 = vadd.f32 %v1804, %v1817
  %1819 = vdwg.mxu0
  %1820 = vmatpush.bf16.msra.mxu0 %v1401
  %1821 = vmatpush.bf16.msra.mxu0 %v1400
  %1822 = vmatpush.bf16.msra.mxu0 %v1399
  %1823 = vmatpush.bf16.msra.mxu0 %v1398
  %1824 = vmatpush.bf16.msra.mxu0 %v1397
  %1825 = vmatpush.bf16.msra.mxu0 %v1396
  %1826 = vmatpush.bf16.msra.mxu0 %v1395
  %1827 = vmatpush.bf16.msra.mxu0 %v1394
  %1828 = vmatmul.bf16.gmra.mxu0 %v529
  %v1829 = vpop.f32.mrf.mxu0
  %v1830 = vadd.f32 %v1816, %v1829
  %v1831 = vpop.f32.mrf.mxu0
  %v1832 = vadd.f32 %v1818, %v1831
  %1833 = vdwg.mxu0
  %1834 = vmatpush.bf16.msra.mxu0 %v1409
  %1835 = vmatpush.bf16.msra.mxu0 %v1408
  %1836 = vmatpush.bf16.msra.mxu0 %v1407
  %1837 = vmatpush.bf16.msra.mxu0 %v1406
  %1838 = vmatpush.bf16.msra.mxu0 %v1405
  %1839 = vmatpush.bf16.msra.mxu0 %v1404
  %1840 = vmatpush.bf16.msra.mxu0 %v1403
  %1841 = vmatpush.bf16.msra.mxu0 %v1402
  %1842 = vmatmul.bf16.gmra.mxu0 %v530
  %v1843 = vpop.f32.mrf.mxu0
  %v1844 = vadd.f32 %v1830, %v1843
  %v1845 = vpop.f32.mrf.mxu0
  %v1846 = vadd.f32 %v1832, %v1845
  %1847 = vdwg.mxu0
  %1848 = vmatpush.bf16.msra.mxu0 %v1417
  %1849 = vmatpush.bf16.msra.mxu0 %v1416
  %1850 = vmatpush.bf16.msra.mxu0 %v1415
  %1851 = vmatpush.bf16.msra.mxu0 %v1414
  %1852 = vmatpush.bf16.msra.mxu0 %v1413
  %1853 = vmatpush.bf16.msra.mxu0 %v1412
  %1854 = vmatpush.bf16.msra.mxu0 %v1411
  %1855 = vmatpush.bf16.msra.mxu0 %v1410
  %1856 = vmatmul.bf16.gmra.mxu0 %v531
  %v1857 = vpop.f32.mrf.mxu0
  %v1858 = vadd.f32 %v1844, %v1857
  %v1859 = vpop.f32.mrf.mxu0
  %v1860 = vadd.f32 %v1846, %v1859
  %1861 = vdwg.mxu0
  %1862 = vmatpush.bf16.msra.mxu0 %v1425
  %1863 = vmatpush.bf16.msra.mxu0 %v1424
  %1864 = vmatpush.bf16.msra.mxu0 %v1423
  %1865 = vmatpush.bf16.msra.mxu0 %v1422
  %1866 = vmatpush.bf16.msra.mxu0 %v1421
  %1867 = vmatpush.bf16.msra.mxu0 %v1420
  %1868 = vmatpush.bf16.msra.mxu0 %v1419
  %1869 = vmatpush.bf16.msra.mxu0 %v1418
  %1870 = vmatmul.bf16.gmra.mxu0 %v532
  %v1871 = vpop.f32.mrf.mxu0
  %v1872 = vadd.f32 %v1858, %v1871
  %v1873 = vpop.f32.mrf.mxu0
  %v1874 = vadd.f32 %v1860, %v1873
  %1875 = vdwg.mxu0
  %1876 = vmatpush.bf16.msra.mxu0 %v1433
  %1877 = vmatpush.bf16.msra.mxu0 %v1432
  %1878 = vmatpush.bf16.msra.mxu0 %v1431
  %1879 = vmatpush.bf16.msra.mxu0 %v1430
  %1880 = vmatpush.bf16.msra.mxu0 %v1429
  %1881 = vmatpush.bf16.msra.mxu0 %v1428
  %1882 = vmatpush.bf16.msra.mxu0 %v1427
  %1883 = vmatpush.bf16.msra.mxu0 %v1426
  %1884 = vmatmul.bf16.gmra.mxu0 %v533
  %v1885 = vpop.f32.mrf.mxu0
  %v1886 = vadd.f32 %v1872, %v1885
  %v1887 = vpop.f32.mrf.mxu0
  %v1888 = vadd.f32 %v1874, %v1887
  %1889 = vdwg.mxu0
  %1890 = vmatpush.bf16.msra.mxu0 %v1441
  %1891 = vmatpush.bf16.msra.mxu0 %v1440
  %1892 = vmatpush.bf16.msra.mxu0 %v1439
  %1893 = vmatpush.bf16.msra.mxu0 %v1438
  %1894 = vmatpush.bf16.msra.mxu0 %v1437
  %1895 = vmatpush.bf16.msra.mxu0 %v1436
  %1896 = vmatpush.bf16.msra.mxu0 %v1435
  %1897 = vmatpush.bf16.msra.mxu0 %v1434
  %1898 = vmatmul.bf16.gmra.mxu0 %v534
  %v1899 = vpop.f32.mrf.mxu0
  %v1900 = vadd.f32 %v1886, %v1899
  %v1901 = vpop.f32.mrf.mxu0
  %v1902 = vadd.f32 %v1888, %v1901
  %1903 = vdwg.mxu0
  %1904 = vmatpush.bf16.msra.mxu0 %v1449
  %1905 = vmatpush.bf16.msra.mxu0 %v1448
  %1906 = vmatpush.bf16.msra.mxu0 %v1447
  %1907 = vmatpush.bf16.msra.mxu0 %v1446
  %1908 = vmatpush.bf16.msra.mxu0 %v1445
  %1909 = vmatpush.bf16.msra.mxu0 %v1444
  %1910 = vmatpush.bf16.msra.mxu0 %v1443
  %1911 = vmatpush.bf16.msra.mxu0 %v1442
  %1912 = vmatmul.bf16.gmra.mxu0 %v535
  %v1913 = vpop.f32.mrf.mxu0
  %v1914 = vadd.f32 %v1900, %v1913
  %v1915 = vpop.f32.mrf.mxu0
  %v1916 = vadd.f32 %v1902, %v1915
  %1917 = vdwg.mxu0
  %1918 = vmatpush.bf16.msra.mxu0 %v1457
  %1919 = vmatpush.bf16.msra.mxu0 %v1456
  %1920 = vmatpush.bf16.msra.mxu0 %v1455
  %1921 = vmatpush.bf16.msra.mxu0 %v1454
  %1922 = vmatpush.bf16.msra.mxu0 %v1453
  %1923 = vmatpush.bf16.msra.mxu0 %v1452
  %1924 = vmatpush.bf16.msra.mxu0 %v1451
  %1925 = vmatpush.bf16.msra.mxu0 %v1450
  %1926 = vmatmul.bf16.gmra.mxu0 %v536
  %v1927 = vpop.f32.mrf.mxu0
  %v1928 = vadd.f32 %v1914, %v1927
  %v1929 = vpop.f32.mrf.mxu0
  %v1930 = vadd.f32 %v1916, %v1929
  %1931 = vdwg.mxu0
  %1932 = vmatpush.bf16.msra.mxu0 %v1465
  %1933 = vmatpush.bf16.msra.mxu0 %v1464
  %1934 = vmatpush.bf16.msra.mxu0 %v1463
  %1935 = vmatpush.bf16.msra.mxu0 %v1462
  %1936 = vmatpush.bf16.msra.mxu0 %v1461
  %1937 = vmatpush.bf16.msra.mxu0 %v1460
  %1938 = vmatpush.bf16.msra.mxu0 %v1459
  %1939 = vmatpush.bf16.msra.mxu0 %v1458
  %1940 = vmatmul.bf16.gmra.mxu0 %v537
  %v1941 = vpop.f32.mrf.mxu0
  %v1942 = vadd.f32 %v1928, %v1941
  %v1943 = vpop.f32.mrf.mxu0
  %v1944 = vadd.f32 %v1930, %v1943
  %1945 = vdwg.mxu0
  %1946 = vmatpush.bf16.msra.mxu0 %v1473
  %1947 = vmatpush.bf16.msra.mxu0 %v1472
  %1948 = vmatpush.bf16.msra.mxu0 %v1471
  %1949 = vmatpush.bf16.msra.mxu0 %v1470
  %1950 = vmatpush.bf16.msra.mxu0 %v1469
  %1951 = vmatpush.bf16.msra.mxu0 %v1468
  %1952 = vmatpush.bf16.msra.mxu0 %v1467
  %1953 = vmatpush.bf16.msra.mxu0 %v1466
  %1954 = vmatmul.bf16.gmra.mxu0 %v538
  %v1955 = vpop.f32.mrf.mxu0
  %v1956 = vadd.f32 %v1942, %v1955
  %v1957 = vpop.f32.mrf.mxu0
  %v1958 = vadd.f32 %v1944, %v1957
  %1959 = vdwg.mxu0
  %1960 = vmatpush.bf16.msra.mxu0 %v1481
  %1961 = vmatpush.bf16.msra.mxu0 %v1480
  %1962 = vmatpush.bf16.msra.mxu0 %v1479
  %1963 = vmatpush.bf16.msra.mxu0 %v1478
  %1964 = vmatpush.bf16.msra.mxu0 %v1477
  %1965 = vmatpush.bf16.msra.mxu0 %v1476
  %1966 = vmatpush.bf16.msra.mxu0 %v1475
  %1967 = vmatpush.bf16.msra.mxu0 %v1474
  %1968 = vmatmul.bf16.gmra.mxu0 %v539
  %v1969 = vpop.f32.mrf.mxu0
  %v1970 = vadd.f32 %v1956, %v1969
  %v1971 = vpop.f32.mrf.mxu0
  %v1972 = vadd.f32 %v1958, %v1971
  %1973 = vdwg.mxu0
  %1974 = vmatpush.bf16.msra.mxu0 %v1489
  %1975 = vmatpush.bf16.msra.mxu0 %v1488
  %1976 = vmatpush.bf16.msra.mxu0 %v1487
  %1977 = vmatpush.bf16.msra.mxu0 %v1486
  %1978 = vmatpush.bf16.msra.mxu0 %v1485
  %1979 = vmatpush.bf16.msra.mxu0 %v1484
  %1980 = vmatpush.bf16.msra.mxu0 %v1483
  %1981 = vmatpush.bf16.msra.mxu0 %v1482
  %1982 = vmatmul.bf16.gmra.mxu0 %v540
  %v1983 = vpop.f32.mrf.mxu0
  %v1984 = vadd.f32 %v1970, %v1983
  %v1985 = vpop.f32.mrf.mxu0
  %v1986 = vadd.f32 %v1972, %v1985
  %1987 = vdwg.mxu0
  %1988 = vmatpush.bf16.msra.mxu0 %v1497
  %1989 = vmatpush.bf16.msra.mxu0 %v1496
  %1990 = vmatpush.bf16.msra.mxu0 %v1495
  %1991 = vmatpush.bf16.msra.mxu0 %v1494
  %1992 = vmatpush.bf16.msra.mxu0 %v1493
  %1993 = vmatpush.bf16.msra.mxu0 %v1492
  %1994 = vmatpush.bf16.msra.mxu0 %v1491
  %1995 = vmatpush.bf16.msra.mxu0 %v1490
  %1996 = vmatmul.bf16.gmra.mxu0 %v541
  %v1997 = vpop.f32.mrf.mxu0
  %v1998 = vadd.f32 %v1984, %v1997
  %v1999 = vpop.f32.mrf.mxu0
  %v2000 = vadd.f32 %v1986, %v1999
  %2001 = vdwg.mxu0
  %2002 = vmatpush.bf16.msra.mxu0 %v1505
  %2003 = vmatpush.bf16.msra.mxu0 %v1504
  %2004 = vmatpush.bf16.msra.mxu0 %v1503
  %2005 = vmatpush.bf16.msra.mxu0 %v1502
  %2006 = vmatpush.bf16.msra.mxu0 %v1501
  %2007 = vmatpush.bf16.msra.mxu0 %v1500
  %2008 = vmatpush.bf16.msra.mxu0 %v1499
  %2009 = vmatpush.bf16.msra.mxu0 %v1498
  %2010 = vmatmul.bf16.gmra.mxu0 %v542
  %v2011 = vpop.f32.mrf.mxu0
  %v2012 = vadd.f32 %v1998, %v2011
  %v2013 = vpop.f32.mrf.mxu0
  %v2014 = vadd.f32 %v2000, %v2013
  %2015 = vdwg.mxu0
  %2016 = vmatpush.bf16.msra.mxu0 %v1513
  %2017 = vmatpush.bf16.msra.mxu0 %v1512
  %2018 = vmatpush.bf16.msra.mxu0 %v1511
  %2019 = vmatpush.bf16.msra.mxu0 %v1510
  %2020 = vmatpush.bf16.msra.mxu0 %v1509
  %2021 = vmatpush.bf16.msra.mxu0 %v1508
  %2022 = vmatpush.bf16.msra.mxu0 %v1507
  %2023 = vmatpush.bf16.msra.mxu0 %v1506
  %2024 = vmatmul.bf16.gmra.mxu0 %v543
  %v2025 = vpop.f32.mrf.mxu0
  %v2026 = vadd.f32 %v2012, %v2025
  %v2027 = vpop.f32.mrf.mxu0
  %v2028 = vadd.f32 %v2014, %v2027
  %2029 = vdwg.mxu0
  %2030 = vmatpush.bf16.msra.mxu0 %v1521
  %2031 = vmatpush.bf16.msra.mxu0 %v1520
  %2032 = vmatpush.bf16.msra.mxu0 %v1519
  %2033 = vmatpush.bf16.msra.mxu0 %v1518
  %2034 = vmatpush.bf16.msra.mxu0 %v1517
  %2035 = vmatpush.bf16.msra.mxu0 %v1516
  %2036 = vmatpush.bf16.msra.mxu0 %v1515
  %2037 = vmatpush.bf16.msra.mxu0 %v1514
  %2038 = vmatmul.bf16.gmra.mxu0 %v544
  %v2039 = vpop.f32.mrf.mxu0
  %v2040 = vadd.f32 %v2026, %v2039
  %v2041 = vpop.f32.mrf.mxu0
  %v2042 = vadd.f32 %v2028, %v2041
  %2043 = vdwg.mxu0
  %2044 = vmatpush.bf16.msra.mxu0 %v1529
  %2045 = vmatpush.bf16.msra.mxu0 %v1528
  %2046 = vmatpush.bf16.msra.mxu0 %v1527
  %2047 = vmatpush.bf16.msra.mxu0 %v1526
  %2048 = vmatpush.bf16.msra.mxu0 %v1525
  %2049 = vmatpush.bf16.msra.mxu0 %v1524
  %2050 = vmatpush.bf16.msra.mxu0 %v1523
  %2051 = vmatpush.bf16.msra.mxu0 %v1522
  %2052 = vmatmul.bf16.gmra.mxu0 %v545
  %v2053 = vpop.f32.mrf.mxu0
  %v2054 = vadd.f32 %v2040, %v2053
  %v2055 = vpop.f32.mrf.mxu0
  %v2056 = vadd.f32 %v2042, %v2055
  %2057 = vdwg.mxu0
  %v2058 = vmax.f32 %v2054, 0.0
  %v2059 = vmax.f32 %v2056, 0.0
  %v2060 = vpack.c.bf16 %v2059, %v2058
  %v2061 = vld [vmem:[%s3] sm:$0xf]
  %v2062 = vld [vmem:[%s3 + $0x4] sm:$0xf]
  %v2063 = vld [vmem:[%s3 + $0x8] sm:$0xf]
  %v2064 = vld [vmem:[%s3 + $0xc] sm:$0xf]
  %v2065 = vld [vmem:[%s3 + $0x10] sm:$0xf]
  %v2066 = vld [vmem:[%s3 + $0x14] sm:$0xf]
  %v2067 = vld [vmem:[%s3 + $0x18] sm:$0xf]
  %v2068 = vld [vmem:[%s3 + $0x1c] sm:$0xf]
  %v2069 = vld [vmem:[%s3 + $0x20] sm:$0xf]
  %v2070 = vld [vmem:[%s3 + $0x24] sm:$0xf]
  %v2071 = vld [vmem:[%s3 + $0x28] sm:$0xf]
  %v2072 = vld [vmem:[%s3 + $0x2c] sm:$0xf]
  %v2073 = vld [vmem:[%s3 + $0x30] sm:$0xf]
  %v2074 = vld [vmem:[%s3 + $0x34] sm:$0xf]
  %v2075 = vld [vmem:[%s3 + $0x38] sm:$0xf]
  %v2076 = vld [vmem:[%s3 + $0x3c] sm:$0xf]
  %v2077 = vld [vmem:[%s4] sm:$0x1]
  %v2079 = vperm.slane %v2077, 0
  %v2097 = vunpack.c.l.b16 %v2061
  %v2098 = vunpack.c.l.b16 %v2062
  %v2099 = vunpack.c.l.b16 %v2063
  %v2100 = vunpack.c.l.b16 %v2064
  %v2101 = vunpack.c.l.b16 %v2065
  %v2102 = vunpack.c.l.b16 %v2066
  %v2103 = vunpack.c.l.b16 %v2067
  %v2104 = vunpack.c.l.b16 %v2068
  %v2105 = vunpack.c.l.b16 %v2069
  %v2106 = vunpack.c.l.b16 %v2070
  %v2107 = vunpack.c.l.b16 %v2071
  %v2108 = vunpack.c.l.b16 %v2072
  %v2109 = vunpack.c.l.b16 %v2073
  %v2110 = vunpack.c.l.b16 %v2074
  %v2111 = vunpack.c.l.b16 %v2075
  %v2112 = vunpack.c.l.b16 %v2076
  %v2113 = vpack.c.b16 %v2098, %v2097
  %v2114 = vpack.c.b16 %v2100, %v2099
  %v2115 = vpack.c.b16 %v2102, %v2101
  %v2116 = vpack.c.b16 %v2104, %v2103
  %v2117 = vpack.c.b16 %v2106, %v2105
  %v2118 = vpack.c.b16 %v2108, %v2107
  %v2119 = vpack.c.b16 %v2110, %v2109
  %v2120 = vpack.c.b16 %v2112, %v2111
  %2129 = vmatpush.bf16.msra.mxu0 %v2120
  %2130 = vmatpush.bf16.msra.mxu0 %v2119
  %2131 = vmatpush.bf16.msra.mxu0 %v2118
  %2132 = vmatpush.bf16.msra.mxu0 %v2117
  %2133 = vmatpush.bf16.msra.mxu0 %v2116
  %2134 = vmatpush.bf16.msra.mxu0 %v2115
  %2135 = vmatpush.bf16.msra.mxu0 %v2114
  %2136 = vmatpush.bf16.msra.mxu0 %v2113
  %2137 = vmatmul.bf16.gmra.mxu0 %v2060
  %v2138 = vpop.f32.mrf.mxu0
  %v2139 = vadd.f32 %v2079, %v2138
  %v2140 = vpop.f32.mrf.mxu0
  %v2141 = vadd.f32 %v2079, %v2140
  %2142 = vdwg.mxu0
  %v2143 = vmax.f32 %v2139, 0.0
  %v2144 = vmax.f32 %v2141, 0.0
  %v2145 = vpack.c.bf16 %v2144, %v2143
  %v2146 = vld [vmem:[%s5] sm:$0xff]
  %v2147 = vld [vmem:[%s5 + $0x8] sm:$0xff]
  %v2148 = vld [vmem:[%s5 + $0x10] sm:$0xff]
  %v2149 = vld [vmem:[%s5 + $0x18] sm:$0xff]
  %v2150 = vld [vmem:[%s5 + $0x20] sm:$0xff]
  %v2151 = vld [vmem:[%s5 + $0x28] sm:$0xff]
  %v2152 = vld [vmem:[%s5 + $0x30] sm:$0xff]
  %v2153 = vld [vmem:[%s5 + $0x38] sm:$0xff]
  %v2154 = vld [vmem:[%s5 + $0x40] sm:$0xff]
  %v2155 = vld [vmem:[%s5 + $0x48] sm:$0xff]
  %v2156 = vld [vmem:[%s5 + $0x50] sm:$0xff]
  %v2157 = vld [vmem:[%s5 + $0x58] sm:$0xff]
  %v2158 = vld [vmem:[%s5 + $0x60] sm:$0xff]
  %v2159 = vld [vmem:[%s5 + $0x68] sm:$0xff]
  %v2160 = vld [vmem:[%s5 + $0x70] sm:$0xff]
  %v2161 = vld [vmem:[%s5 + $0x78] sm:$0xff]
  %v2162 = vld [vmem:[%s6] sm:$0x3]
  %v2164 = vperm.slane %v2162, 0
  %v2165 = vperm.slane %v2162, 1
  %v2184 = vunpack.c.l.b16 %v2146
  %v2185 = vunpack.c.h.b16 %v2146
  %v2186 = vunpack.c.l.b16 %v2147
  %v2187 = vunpack.c.h.b16 %v2147
  %v2188 = vunpack.c.l.b16 %v2148
  %v2189 = vunpack.c.h.b16 %v2148
  %v2190 = vunpack.c.l.b16 %v2149
  %v2191 = vunpack.c.h.b16 %v2149
  %v2192 = vunpack.c.l.b16 %v2150
  %v2193 = vunpack.c.h.b16 %v2150
  %v2194 = vunpack.c.l.b16 %v2151
  %v2195 = vunpack.c.h.b16 %v2151
  %v2196 = vunpack.c.l.b16 %v2152
  %v2197 = vunpack.c.h.b16 %v2152
  %v2198 = vunpack.c.l.b16 %v2153
  %v2199 = vunpack.c.h.b16 %v2153
  %v2200 = vunpack.c.l.b16 %v2154
  %v2201 = vunpack.c.h.b16 %v2154
  %v2202 = vunpack.c.l.b16 %v2155
  %v2203 = vunpack.c.h.b16 %v2155
  %v2204 = vunpack.c.l.b16 %v2156
  %v2205 = vunpack.c.h.b16 %v2156
  %v2206 = vunpack.c.l.b16 %v2157
  %v2207 = vunpack.c.h.b16 %v2157
  %v2208 = vunpack.c.l.b16 %v2158
  %v2209 = vunpack.c.h.b16 %v2158
  %v2210 = vunpack.c.l.b16 %v2159
  %v2211 = vunpack.c.h.b16 %v2159
  %v2212 = vunpack.c.l.b16 %v2160
  %v2213 = vunpack.c.h.b16 %v2160
  %v2214 = vunpack.c.l.b16 %v2161
  %v2215 = vunpack.c.h.b16 %v2161
  %v2216 = vpack.c.b16 %v2186, %v2184
  %v2217 = vpack.c.b16 %v2187, %v2185
  %v2218 = vpack.c.b16 %v2190, %v2188
  %v2219 = vpack.c.b16 %v2191, %v2189
  %v2220 = vpack.c.b16 %v2194, %v2192
  %v2221 = vpack.c.b16 %v2195, %v2193
  %v2222 = vpack.c.b16 %v2198, %v2196
  %v2223 = vpack.c.b16 %v2199, %v2197
  %v2224 = vpack.c.b16 %v2202, %v2200
  %v2225 = vpack.c.b16 %v2203, %v2201
  %v2226 = vpack.c.b16 %v2206, %v2204
  %v2227 = vpack.c.b16 %v2207, %v2205
  %v2228 = vpack.c.b16 %v2210, %v2208
  %v2229 = vpack.c.b16 %v2211, %v2209
  %v2230 = vpack.c.b16 %v2214, %v2212
  %v2231 = vpack.c.b16 %v2215, %v2213
  %2248 = vmatpush.bf16.msra.mxu0 %v2230
  %2249 = vmatpush.bf16.msra.mxu0 %v2228
  %2250 = vmatpush.bf16.msra.mxu0 %v2226
  %2251 = vmatpush.bf16.msra.mxu0 %v2224
  %2252 = vmatpush.bf16.msra.mxu0 %v2222
  %2253 = vmatpush.bf16.msra.mxu0 %v2220
  %2254 = vmatpush.bf16.msra.mxu0 %v2218
  %2255 = vmatpush.bf16.msra.mxu0 %v2216
  %2256 = vmatmul.bf16.gmra.mxu0 %v2145
  %v2257 = vpop.f32.mrf.mxu0
  %v2258 = vadd.f32 %v2164, %v2257
  %v2259 = vpop.f32.mrf.mxu0
  %v2260 = vadd.f32 %v2164, %v2259
  %2261 = vdwg.mxu0
  %2262 = vmatpush.bf16.msra.mxu0 %v2231
  %2263 = vmatpush.bf16.msra.mxu0 %v2229
  %2264 = vmatpush.bf16.msra.mxu0 %v2227
  %2265 = vmatpush.bf16.msra.mxu0 %v2225
  %2266 = vmatpush.bf16.msra.mxu0 %v2223
  %2267 = vmatpush.bf16.msra.mxu0 %v2221
  %2268 = vmatpush.bf16.msra.mxu0 %v2219
  %2269 = vmatpush.bf16.msra.mxu0 %v2217
  %2270 = vmatmul.bf16.gmra.mxu0 %v2145
  %v2271 = vpop.f32.mrf.mxu0
  %v2272 = vadd.f32 %v2165, %v2271
  %v2273 = vpop.f32.mrf.mxu0
  %v2274 = vadd.f32 %v2165, %v2273
  %2275 = vdwg.mxu0
  %v2276 = vmax.f32 %v2258, 0.0
  %v2277 = vmax.f32 %v2272, 0.0
  %v2278 = vmax.f32 %v2260, 0.0
  %v2279 = vmax.f32 %v2274, 0.0
  %v2280 = vpack.c.bf16 %v2278, %v2276
  %v2281 = vpack.c.bf16 %v2279, %v2277
  %v2282 = vld [vmem:[%s7] sm:$0xf]
  %v2283 = vld [vmem:[%s7 + $0x4] sm:$0xf]
  %v2284 = vld [vmem:[%s7 + $0x8] sm:$0xf]
  %v2285 = vld [vmem:[%s7 + $0xc] sm:$0xf]
  %v2286 = vld [vmem:[%s7 + $0x10] sm:$0xf]
  %v2287 = vld [vmem:[%s7 + $0x14] sm:$0xf]
  %v2288 = vld [vmem:[%s7 + $0x18] sm:$0xf]
  %v2289 = vld [vmem:[%s7 + $0x1c] sm:$0xf]
  %v2290 = vld [vmem:[%s7 + $0x20] sm:$0xf]
  %v2291 = vld [vmem:[%s7 + $0x24] sm:$0xf]
  %v2292 = vld [vmem:[%s7 + $0x28] sm:$0xf]
  %v2293 = vld [vmem:[%s7 + $0x2c] sm:$0xf]
  %v2294 = vld [vmem:[%s7 + $0x30] sm:$0xf]
  %v2295 = vld [vmem:[%s7 + $0x34] sm:$0xf]
  %v2296 = vld [vmem:[%s7 + $0x38] sm:$0xf]
  %v2297 = vld [vmem:[%s7 + $0x3c] sm:$0xf]
  %v2298 = vld [vmem:[%s7 + $0x40] sm:$0xf]
  %v2299 = vld [vmem:[%s7 + $0x44] sm:$0xf]
  %v2300 = vld [vmem:[%s7 + $0x48] sm:$0xf]
  %v2301 = vld [vmem:[%s7 + $0x4c] sm:$0xf]
  %v2302 = vld [vmem:[%s7 + $0x50] sm:$0xf]
  %v2303 = vld [vmem:[%s7 + $0x54] sm:$0xf]
  %v2304 = vld [vmem:[%s7 + $0x58] sm:$0xf]
  %v2305 = vld [vmem:[%s7 + $0x5c] sm:$0xf]
  %v2306 = vld [vmem:[%s7 + $0x60] sm:$0xf]
  %v2307 = vld [vmem:[%s7 + $0x64] sm:$0xf]
  %v2308 = vld [vmem:[%s7 + $0x68] sm:$0xf]
  %v2309 = vld [vmem:[%s7 + $0x6c] sm:$0xf]
  %v2310 = vld [vmem:[%s7 + $0x70] sm:$0xf]
  %v2311 = vld [vmem:[%s7 + $0x74] sm:$0xf]
  %v2312 = vld [vmem:[%s7 + $0x78] sm:$0xf]
  %v2313 = vld [vmem:[%s7 + $0x7c] sm:$0xf]
  %v2314 = vld [vmem:[%s8] sm:$0x1]
  %v2316 = vperm.slane %v2314, 0
  %v2350 = vunpack.c.l.b16 %v2282
  %v2351 = vunpack.c.l.b16 %v2283
  %v2352 = vunpack.c.l.b16 %v2284
  %v2353 = vunpack.c.l.b16 %v2285
  %v2354 = vunpack.c.l.b16 %v2286
  %v2355 = vunpack.c.l.b16 %v2287
  %v2356 = vunpack.c.l.b16 %v2288
  %v2357 = vunpack.c.l.b16 %v2289
  %v2358 = vunpack.c.l.b16 %v2290
  %v2359 = vunpack.c.l.b16 %v2291
  %v2360 = vunpack.c.l.b16 %v2292
  %v2361 = vunpack.c.l.b16 %v2293
  %v2362 = vunpack.c.l.b16 %v2294
  %v2363 = vunpack.c.l.b16 %v2295
  %v2364 = vunpack.c.l.b16 %v2296
  %v2365 = vunpack.c.l.b16 %v2297
  %v2366 = vunpack.c.l.b16 %v2298
  %v2367 = vunpack.c.l.b16 %v2299
  %v2368 = vunpack.c.l.b16 %v2300
  %v2369 = vunpack.c.l.b16 %v2301
  %v2370 = vunpack.c.l.b16 %v2302
  %v2371 = vunpack.c.l.b16 %v2303
  %v2372 = vunpack.c.l.b16 %v2304
  %v2373 = vunpack.c.l.b16 %v2305
  %v2374 = vunpack.c.l.b16 %v2306
  %v2375 = vunpack.c.l.b16 %v2307
  %v2376 = vunpack.c.l.b16 %v2308
  %v2377 = vunpack.c.l.b16 %v2309
  %v2378 = vunpack.c.l.b16 %v2310
  %v2379 = vunpack.c.l.b16 %v2311
  %v2380 = vunpack.c.l.b16 %v2312
  %v2381 = vunpack.c.l.b16 %v2313
  %v2382 = vpack.c.b16 %v2351, %v2350
  %v2383 = vpack.c.b16 %v2353, %v2352
  %v2384 = vpack.c.b16 %v2355, %v2354
  %v2385 = vpack.c.b16 %v2357, %v2356
  %v2386 = vpack.c.b16 %v2359, %v2358
  %v2387 = vpack.c.b16 %v2361, %v2360
  %v2388 = vpack.c.b16 %v2363, %v2362
  %v2389 = vpack.c.b16 %v2365, %v2364
  %v2390 = vpack.c.b16 %v2367, %v2366
  %v2391 = vpack.c.b16 %v2369, %v2368
  %v2392 = vpack.c.b16 %v2371, %v2370
  %v2393 = vpack.c.b16 %v2373, %v2372
  %v2394 = vpack.c.b16 %v2375, %v2374
  %v2395 = vpack.c.b16 %v2377, %v2376
  %v2396 = vpack.c.b16 %v2379, %v2378
  %v2397 = vpack.c.b16 %v2381, %v2380
  %2414 = vmatpush.bf16.msra.mxu0 %v2389
  %2415 = vmatpush.bf16.msra.mxu0 %v2388
  %2416 = vmatpush.bf16.msra.mxu0 %v2387
  %2417 = vmatpush.bf16.msra.mxu0 %v2386
  %2418 = vmatpush.bf16.msra.mxu0 %v2385
  %2419 = vmatpush.bf16.msra.mxu0 %v2384
  %2420 = vmatpush.bf16.msra.mxu0 %v2383
  %2421 = vmatpush.bf16.msra.mxu0 %v2382
  %2422 = vmatmul.bf16.gmra.mxu0 %v2280
  %v2423 = vpop.f32.mrf.mxu0
  %v2424 = vadd.f32 %v2316, %v2423
  %v2425 = vpop.f32.mrf.mxu0
  %v2426 = vadd.f32 %v2316, %v2425
  %2427 = vdwg.mxu0
  %2428 = vmatpush.bf16.msra.mxu0 %v2397
  %2429 = vmatpush.bf16.msra.mxu0 %v2396
  %2430 = vmatpush.bf16.msra.mxu0 %v2395
  %2431 = vmatpush.bf16.msra.mxu0 %v2394
  %2432 = vmatpush.bf16.msra.mxu0 %v2393
  %2433 = vmatpush.bf16.msra.mxu0 %v2392
  %2434 = vmatpush.bf16.msra.mxu0 %v2391
  %2435 = vmatpush.bf16.msra.mxu0 %v2390
  %2436 = vmatmul.bf16.gmra.mxu0 %v2281
  %v2437 = vpop.f32.mrf.mxu0
  %v2438 = vadd.f32 %v2424, %v2437
  %v2439 = vpop.f32.mrf.mxu0
  %v2440 = vadd.f32 %v2426, %v2439
  %2441 = vdwg.mxu0
  %v2442 = vld [vmem:[%s9] sm:$0xff]
  %s2443 = smul.u32 0, 16
  %v2444 = vlaneseq
  %v2445 = vshrl.u32 %v2444, 7
  %v2446 = vadd.s32 %v2445, 8
  %v2447 = vstv %s2443
  %v2448 = vadd.s32 %v2445, %v2447
  %v2449 = vadd.s32 %v2446, %v2447
  %v2450 = vcvt.s32.f32 %v2448
  %v2451 = vcvt.s32.f32 %v2449
  %v2452 = vadd.f32 %v2450, 0.5
  %v2453 = vadd.f32 %v2451, 0.5
  %v2454 = vrcp.pop 2.0
  %v2455 = vmul.f32 2.0, %v2454
  %v2456 = vsub.f32 1.0, %v2455
  %v2457 = vmul.f32 %v2454, %v2456
  %v2458 = vadd.f32 %v2454, %v2457
  %vm2459 = vweird.f32 %v2454
  %v2460 = vsel %vm2459, %v2454, %v2458
  %v2461 = vmul.f32 %v2452, %v2460
  %v2462 = vmul.f32 %v2453, %v2460
  %v2463 = vfloor.f32 %v2461
  %v2464 = vfloor.f32 %v2462
  %v2465 = vmul.f32 %v2463, 2.0
  %v2466 = vmul.f32 %v2464, 2.0
  %v2467 = vsub.f32 %v2450, %v2465
  %v2468 = vsub.f32 %v2451, %v2466
  %v2469 = vxor.u32 %v2438, 2147483648
  %v2470 = vxor.u32 %v2440, 2147483648
  %v2471 = vmul.f32 %v2469, 1.442695
  %v2472 = vpow.pop %v2471
  %v2473 = vmul.f32 %v2470, 1.442695
  %v2474 = vpow.pop %v2473
  %v2475 = vadd.f32 %v2472, 1.0
  %v2476 = vadd.f32 %v2474, 1.0
  %v2477 = vrcp.pop %v2475
  %v2478 = vmul.f32 %v2475, %v2477
  %v2479 = vsub.f32 1.0, %v2478
  %v2480 = vmul.f32 %v2477, %v2479
  %v2481 = vadd.f32 %v2477, %v2480
  %vm2482 = vweird.f32 %v2475
  %vm2483 = vweird.f32 %v2477
  %vm2484 = vmor %vm2482, %vm2483
  %v2485 = vsel %vm2484, %v2477, %v2481
  %v2486 = vand.u32 2147483647, %v2475
  %vm2487 = vcmp.eq.f32.partialorder %v2486, 8.507059e+37
  %v2488 = vand.u32 %v2475, 2147483648
  %v2489 = vor.u32 1.1754944e-38, %v2488
  %v2490 = vsel %vm2487, %v2489, %v2485
  %v2491 = vmul.f32 1.0, %v2490
  %v2492 = vrcp.pop %v2476
  %v2493 = vmul.f32 %v2476, %v2492
  %v2494 = vsub.f32 1.0, %v2493
  %v2495 = vmul.f32 %v2492, %v2494
  %v2496 = vadd.f32 %v2492, %v2495
  %vm2497 = vweird.f32 %v2476
  %vm2498 = vweird.f32 %v2492
  %vm2499 = vmor %vm2497, %vm2498
  %v2500 = vsel %vm2499, %v2492, %v2496
  %v2501 = vand.u32 2147483647, %v2476
  %vm2502 = vcmp.eq.f32.partialorder %v2501, 8.507059e+37
  %v2503 = vand.u32 %v2476, 2147483648
  %v2504 = vor.u32 1.1754944e-38, %v2503
  %v2505 = vsel %vm2502, %v2504, %v2500
  %v2506 = vmul.f32 1.0, %v2505
  %v2507 = vperm.slane %v2442, 1
  %v2508 = vmul.f32 %v2438, %v2507
  %v2509 = vmul.f32 %v2440, %v2507
  %v2510 = vmul.f32 %v2508, 1.442695
  %v2511 = vpow.pop %v2510
  %v2512 = vmul.f32 %v2509, 1.442695
  %v2513 = vpow.pop %v2512
  %v2514 = vperm.slane %v2442, 2
  %v2515 = vmul.f32 %v2511, %v2514
  %v2516 = vmul.f32 %v2513, %v2514
  %v2517 = vperm.slane %v2442, 0
  %v2518 = vmul.f32 %v2491, %v2517
  %v2519 = vmul.f32 %v2506, %v2517
  %2522 = vrot.lane.b32.xlu0 %v2518, 2
  %v2523 = vpop.permute.xlu0 %2522
  %2524 = vrot.lane.b32.xlu0 %v2519, 2
  %v2525 = vpop.permute.xlu0 %2524
  %vm2528 = vcmask 15360
  %v2529 = vsel %vm2528, 0.0, %v2523
  %v2530 = vsel %vm2528, 0.0, %v2525
  %v2531 = vadd.f32 %v2518, %v2529
  %v2532 = vadd.f32 %v2519, %v2530
  %v2533 = vperm.slane %v2442, 3
  %v2534 = vmul.f32 %v2467, %v2533
  %v2535 = vmul.f32 %v2468, %v2533
  %v2536 = vadd.f32 %v2531, %v2534
  %v2537 = vadd.f32 %v2532, %v2535
  %v2538 = vperm.slane %v2442, 4
  %v2539 = vmul.f32 %v2463, %v2538
  %v2540 = vmul.f32 %v2464, %v2538
  %v2541 = vadd.f32 %v2536, %v2539
  %v2542 = vadd.f32 %v2537, %v2540
  %v2543 = vadd.f32 %v2541, %v2515
  %v2544 = vadd.f32 %v2542, %v2516
  %2547 = vrot.lane.b32.xlu0 %v2515, 126
  %v2548 = vpop.permute.xlu0 %2547
  %2549 = vrot.lane.b32.xlu0 %v2516, 126
  %v2550 = vpop.permute.xlu0 %2549
  %vm2553 = vcmask 1031168
  %v2554 = vsel %vm2553, %v2548, 0.0
  %v2555 = vsel %vm2553, %v2550, 0.0
  %v2556 = vsub.f32 %v2543, %v2554
  %v2557 = vsub.f32 %v2544, %v2555
  %v2558 = vld [vmem:[%s10] sm:$0xff]
  %v2559 = vld [vmem:[%s10 + $0x8] sm:$0xff]
  %v2560 = vld [vmem:[%s10 + $0x10] sm:$0xff]
  %v2561 = vld [vmem:[%s10 + $0x18] sm:$0xff]
  %v2562 = vld [vmem:[%s10 + $0x20] sm:$0xff]
  %v2563 = vld [vmem:[%s10 + $0x28] sm:$0xff]
  %v2564 = vld [vmem:[%s10 + $0x30] sm:$0xff]
  %v2565 = vld [vmem:[%s10 + $0x38] sm:$0xff]
  %v2566 = vld [vmem:[%s10 + $0x40] sm:$0xff]
  %v2567 = vld [vmem:[%s10 + $0x48] sm:$0xff]
  %v2568 = vld [vmem:[%s10 + $0x50] sm:$0xff]
  %v2569 = vld [vmem:[%s10 + $0x58] sm:$0xff]
  %v2570 = vld [vmem:[%s10 + $0x60] sm:$0xff]
  %v2571 = vld [vmem:[%s10 + $0x68] sm:$0xff]
  %v2572 = vld [vmem:[%s10 + $0x70] sm:$0xff]
  %v2573 = vld [vmem:[%s10 + $0x78] sm:$0xff]
  %2574 = vmatpush.msra.mxu0 %v2573
  %2575 = vmatpush.msra.mxu0 %v2572
  %2576 = vmatpush.msra.mxu0 %v2571
  %2577 = vmatpush.msra.mxu0 %v2570
  %2578 = vmatpush.msra.mxu0 %v2569
  %2579 = vmatpush.msra.mxu0 %v2568
  %2580 = vmatpush.msra.mxu0 %v2567
  %2581 = vmatpush.msra.mxu0 %v2566
  %2582 = vmatpush.msra.mxu0 %v2565
  %2583 = vmatpush.msra.mxu0 %v2564
  %2584 = vmatpush.msra.mxu0 %v2563
  %2585 = vmatpush.msra.mxu0 %v2562
  %2586 = vmatpush.msra.mxu0 %v2561
  %2587 = vmatpush.msra.mxu0 %v2560
  %2588 = vmatpush.msra.mxu0 %v2559
  %2589 = vmatpush.msra.mxu0 %v2558
  %2590 = vmatmul.f32.gmra.mxu0 %v2491
  %v2591 = vpop.f32.mrf.mxu0
  %v2592 = vadd.f32 0.0, %v2591
  %2593 = vmatmul.f32.gmra.mxu0 %v2506
  %v2594 = vpop.f32.mrf.mxu0
  %v2595 = vadd.f32 0.0, %v2594
  %2596 = vdwg.mxu0
  %v2597 = vmul.f32 %v2592, %v2491
  %v2598 = vmul.f32 %v2595, %v2506
  %v2599 = vrsqrt.pop %v2597
  %v2600 = vmul.f32 %v2599, %v2597
  %v2601 = vmul.f32 %v2600, %v2599
  %v2602 = vmul.f32 0.5, %v2601
  %v2603 = vsub.f32 1.5, %v2602
  %v2604 = vmul.f32 %v2599, %v2603
  %v2605 = vmul.f32 %v2597, %v2604
  %vm2606 = vcmp.eq.f32.partialorder %v2597, inf
  %v2607 = vsel %vm2606, %v2597, %v2605
  %vm2608 = vcmp.eq.f32.partialorder %v2597, 0.0
  %v2609 = vand.u32 %v2597, 2147483648
  %v2610 = vsel %vm2608, %v2609, %v2607
  %v2611 = vrsqrt.pop %v2598
  %v2612 = vmul.f32 %v2611, %v2598
  %v2613 = vmul.f32 %v2612, %v2611
  %v2614 = vmul.f32 0.5, %v2613
  %v2615 = vsub.f32 1.5, %v2614
  %v2616 = vmul.f32 %v2611, %v2615
  %v2617 = vmul.f32 %v2598, %v2616
  %vm2618 = vcmp.eq.f32.partialorder %v2598, inf
  %v2619 = vsel %vm2618, %v2598, %v2617
  %vm2620 = vcmp.eq.f32.partialorder %v2598, 0.0
  %v2621 = vand.u32 %v2598, 2147483648
  %v2622 = vsel %vm2620, %v2621, %v2619
  %v2623 = vadd.f32 %v2556, %v2610
  %v2624 = vadd.f32 %v2557, %v2622
  %2625 = vst [vmem:[%s11] sm:$0xff] %v2623
  %2626 = vst [vmem:[%s11 + $0x8] sm:$0xff] %v2624
  // Predicated region
  $region46: #{yolov2_deploy_forward.1} parent=0 // pred_check
    _
  $region47: #{yolov2_deploy_forward.1} parent=0 // pred_check_branch
    %2628 = sbr.rel (0) target = $region49
  $region48: #{yolov2_deploy_forward.1} parent=0 // pred_region
    _
  $region49: #{yolov2_deploy_forward.1} parent=0 // pred_fallthru
    _
  // Predicated region
  $region50: #{yolov2_deploy_forward.1} parent=0 // pred_check
    _
  $region51: #{yolov2_deploy_forward.1} parent=0 // pred_check_branch
    %2630 = sbr.rel (0) target = $region53
  $region52: #{yolov2_deploy_forward.1} parent=0 // pred_region
    _
  $region53: #{yolov2_deploy_forward.1} parent=0 // pred_fallthru
    _

</llo_original>
